<compile_context>
chip_gen: v5e
topology: v5e:2x2
jax: 0.10.0
libtpu: 0.0.40
codegen_flags: <defaults>
</compile_context>

<pallas_src>
import jax
import jax.numpy as jnp
from jax import lax
from jax.experimental import pallas as pl
from jax.experimental.pallas import tpu as pltpu

EPS = 1e-5


# --------------------------------------------------------------------------
# Banded block-Toeplitz conv weights with the dx (column) shift baked in:
#   B[dy][w'*Ci + ci, w*Co + co] = w_hwio[dy, dx, ci, co]   with w' = w + dx - 1
# so a 3x3 / stride-1 / pad-1 conv of an (H, W*Ci) row slab that only carries a
# 1-row top/bottom halo (NO column halo) is
#   y[h, :] = sum_dy  slab[h + dy, :] @ B[dy],      K = W*Ci.
# --------------------------------------------------------------------------
def _band_weights(w_hwio, W):
    kh, kw, Ci, Co = w_hwio.shape
    mats = []
    for dy in range(kh):
        m = jnp.zeros((W * Ci, W * Co), jnp.float32)
        for dx in range(kw):
            m = m + jnp.kron(jnp.eye(W, W, k=1 - dx, dtype=jnp.float32),
                             w_hwio[dy, dx].astype(jnp.float32))
        mats.append(m)
    return jnp.stack(mats, axis=0).astype(jnp.bfloat16)   # (3, W*Ci, W*Co)


def _pick_block_n(N):
    """Images per grid step.  Larger blocks raise MXU row occupancy
    (M = NB*(H+2) - 2 per push), but we keep >= 2 grid steps when possible so
    the 'parallel' batch axis can still be split across v7x's two TCs."""
    for nb in (8, 4, 2):
        if N % nb == 0 and N // nb >= 2:
            return nb
    return 1


def _bn_fold(s, q, gamma, beta, m_total):
    mean = s / m_total
    var = q / m_total - mean * mean          # biased variance (PyTorch train)
    scale = gamma / jnp.sqrt(var + EPS)
    return scale, beta - mean * scale


# --------------------------------------------------------------------------
# Full ResidualBlock forward
# --------------------------------------------------------------------------
def residual_block_pallas(x_nchw, params):
    (w1, g1, b1, w2, g2, b2, wsc, gsc, bsc) = params
    N, Cin, H, W = x_nchw.shape
    Cout = w1.shape[-1]
    K1 = W * Cin                  # conv1 / shortcut contraction width
    L = W * Cout                  # lane width of activations (=128 in demo)

    NB = _pick_block_n(N)         # images per grid step
    G = N // NB                   # grid steps (batch-tiled, "parallel")
    SLAB = H + 2                  # per-image row-halo slab height
    MS = NB * SLAB - 2            # rows per banded matmul push (2 wasted/img)
    BM = NB * H                   # activation rows per grid step

    # NCHW -> lane-dense (N*H, W*C) slab; the f32->bf16 cast fuses into the
    # transpose copy so passes A and C read bf16 from HBM.
    # TODO(synk): keep activations in this lane-dense NHWC form across the
    # surrounding network to drop the NCHW<->slab transposes entirely.
    x2d = jnp.transpose(x_nchw, (0, 2, 3, 1)).reshape(N * H, K1)
    x2d = x2d.astype(jnp.bfloat16)

    B1 = _band_weights(w1, W)                                    # (3, K1, L)
    B2 = _band_weights(w2, W)                                    # (3, L,  L)
    bsc_f32 = jnp.kron(jnp.eye(W, dtype=jnp.float32),
                       wsc.astype(jnp.float32))                  # (K1, L)
    Bsc = bsc_f32.astype(jnp.bfloat16)

    cparams = pltpu.CompilerParams(dimension_semantics=("parallel",))

    # ---------------- Pass A: conv1 + shortcut-BN partial stats ------------
    def kernel_a(x_ref, b1_ref, bsc_ref, y1_ref, st_ref, pad_ref):
        zrow = jnp.zeros((1, K1), jnp.bfloat16)
        xb = x_ref[...]                                   # bf16 (BM, K1)
        # per-image row-halo slabs; only halo rows are zeroed (interior is
        # fully overwritten every step -> megacore/per-core-scratch safe)
        for n in range(NB):
            base = n * SLAB
            pad_ref[base:base + 1, :] = zrow
            pad_ref[base + 1:base + 1 + H, :] = xb[n * H:(n + 1) * H, :]
            pad_ref[base + H + 1:base + H + 2, :] = zrow
        # conv1: 3 row-shifted banded matmuls over the whole slab
        # (dx baked in -> K = W*Cin, no column halo; bf16 operands, f32 acc)
        acc = jnp.dot(pad_ref[0:MS, :], b1_ref[0],
                      preferred_element_type=jnp.float32)
        for dy in range(1, 3):
            acc = acc + jnp.dot(pad_ref[dy:dy + MS, :], b1_ref[dy],
                                preferred_element_type=jnp.float32)
        # shortcut 1x1 conv: needed here only for its BN statistics (the
        # shortcut itself is recomputed fused in pass C -> no HBM round trip)
        ysc = jnp.dot(xb, bsc_ref[...], preferred_element_type=jnp.float32)
        # extract the valid output rows per image + BN1 partial sums
        s1 = jnp.zeros((1, L), jnp.float32)
        q1 = jnp.zeros((1, L), jnp.float32)
        for n in range(NB):
            v = acc[n * SLAB:n * SLAB + H, :]
            y1_ref[n * H:(n + 1) * H, :] = v.astype(jnp.bfloat16)
            s1 = s1 + jnp.sum(v, axis=0, keepdims=True)
            q1 = q1 + jnp.sum(v * v, axis=0, keepdims=True)
        # single (4, L) stats store instead of four masked 1-row stores
        st_ref[...] = jnp.concatenate(
            [s1, q1,
             jnp.sum(ysc, axis=0, keepdims=True),
             jnp.sum(ysc * ysc, axis=0, keepdims=True)], axis=0)

    y1, st_a = pl.pallas_call(
        kernel_a,
        out_shape=(jax.ShapeDtypeStruct((N * H, L), jnp.bfloat16),
                   jax.ShapeDtypeStruct((G, 4, L), jnp.float32)),
        grid=(G,),
        in_specs=[pl.BlockSpec((BM, K1), lambda g: (g, 0)),
                  pl.BlockSpec((3, K1, L), lambda g: (0, 0, 0)),
                  pl.BlockSpec((K1, L), lambda g: (0, 0))],
        out_specs=(pl.BlockSpec((BM, L), lambda g: (g, 0)),
                   pl.BlockSpec((None, 4, L), lambda g: (g, 0, 0))),
        scratch_shapes=[pltpu.VMEM((NB * SLAB, K1), jnp.bfloat16)],
        compiler_params=cparams,
    )(x2d, B1, Bsc)

    # ---------------- tiny (C,)-sized BN1 / BN_sc fold ---------------------
    m_total = float(N * H * W)
    per_ch_a = st_a.sum(axis=0).reshape(4, W, Cout).sum(axis=1)   # (4, Cout)
    s1c, t1c = _bn_fold(per_ch_a[0], per_ch_a[1], g1, b1, m_total)
    sscc, tscc = _bn_fold(per_ch_a[2], per_ch_a[3], gsc, bsc, m_total)
    aff1 = jnp.stack([jnp.tile(s1c, W), jnp.tile(t1c, W)], axis=0)   # (2, L)

    # ---------------- Pass B: BN1+ReLU -> conv2 + BN2 partial stats --------
    def kernel_b(y1_ref, aff_ref, b2_ref, y2_ref, st_ref, pad_ref):
        sc1 = aff_ref[0:1, :]
        sh1 = aff_ref[1:2, :]
        zrow = jnp.zeros((1, L), jnp.bfloat16)
        # BN1 + ReLU prologue, written straight into the bf16 conv2 halo slab
        # (h1 never touches HBM); done per image to bound live ranges
        for n in range(NB):
            base = n * SLAB
            h1n = jnp.maximum(
                y1_ref[n * H:(n + 1) * H, :].astype(jnp.float32) * sc1 + sh1,
                0.0)
            pad_ref[base:base + 1, :] = zrow
            pad_ref[base + 1:base + 1 + H, :] = h1n.astype(jnp.bfloat16)
            pad_ref[base + H + 1:base + H + 2, :] = zrow
        # conv2: banded matmuls over the slab (K = W*Cout)
        acc = jnp.dot(pad_ref[0:MS, :], b2_ref[0],
                      preferred_element_type=jnp.float32)
        for dy in range(1, 3):
            acc = acc + jnp.dot(pad_ref[dy:dy + MS, :], b2_ref[dy],
                                preferred_element_type=jnp.float32)
        # extract valid rows + BN2 partial sums (BN2 stats are folded in JAX,
        # so this pass can tile over the batch instead of grid=(1,))
        s2 = jnp.zeros((1, L), jnp.float32)
        q2 = jnp.zeros((1, L), jnp.float32)
        for n in range(NB):
            v = acc[n * SLAB:n * SLAB + H, :]
            y2_ref[n * H:(n + 1) * H, :] = v.astype(jnp.bfloat16)
            s2 = s2 + jnp.sum(v, axis=0, keepdims=True)
            q2 = q2 + jnp.sum(v * v, axis=0, keepdims=True)
        st_ref[...] = jnp.concatenate([s2, q2], axis=0)

    y2, st_b = pl.pallas_call(
        kernel_b,
        out_shape=(jax.ShapeDtypeStruct((N * H, L), jnp.bfloat16),
                   jax.ShapeDtypeStruct((G, 2, L), jnp.float32)),
        grid=(G,),
        in_specs=[pl.BlockSpec((BM, L), lambda g: (g, 0)),
                  pl.BlockSpec((2, L), lambda g: (0, 0)),
                  pl.BlockSpec((3, L, L), lambda g: (0, 0, 0))],
        out_specs=(pl.BlockSpec((BM, L), lambda g: (g, 0)),
                   pl.BlockSpec((None, 2, L), lambda g: (g, 0, 0))),
        scratch_shapes=[pltpu.VMEM((NB * SLAB, L), jnp.bfloat16)],
        compiler_params=cparams,
    )(y1, aff1, B2)

    # ---------------- tiny BN2 fold + BN_sc scale folded into 1x1 weights --
    per_ch_b = st_b.sum(axis=0).reshape(2, W, Cout).sum(axis=1)   # (2, Cout)
    s2c, t2c = _bn_fold(per_ch_b[0], per_ch_b[1], g2, b2, m_total)
    aff2 = jnp.stack([jnp.tile(s2c, W), jnp.tile(t2c, W),
                      jnp.tile(tscc, W)], axis=0)                 # (3, L)
    bsc_scaled = (bsc_f32 * jnp.tile(sscc, W)[None, :]).astype(jnp.bfloat16)

    # ---------------- Pass C: shortcut + BN2/BN_sc + add + ReLU ------------
    def kernel_c(y2_ref, x_ref, aff_ref, bscs_ref, out_ref):
        sc2 = aff_ref[0:1, :]
        sh2 = aff_ref[1:2, :]
        tsc = aff_ref[2:3, :]
        # shortcut recomputed from bf16 x with BN_sc scale folded into the 1x1
        # weights (cheaper than a full y_sc f32 HBM round trip)
        ysc = jnp.dot(x_ref[...], bscs_ref[...],
                      preferred_element_type=jnp.float32)
        out_ref[...] = jnp.maximum(
            y2_ref[...].astype(jnp.float32) * sc2 + sh2 + ysc + tsc, 0.0)

    out2d = pl.pallas_call(
        kernel_c,
        out_shape=jax.ShapeDtypeStruct((N * H, L), jnp.float32),
        grid=(G,),
        in_specs=[pl.BlockSpec((BM, L), lambda g: (g, 0)),
                  pl.BlockSpec((BM, K1), lambda g: (g, 0)),
                  pl.BlockSpec((3, L), lambda g: (0, 0)),
                  pl.BlockSpec((K1, L), lambda g: (0, 0))],
        out_specs=pl.BlockSpec((BM, L), lambda g: (g, 0)),
        compiler_params=cparams,
    )(y2, x2d, aff2, bsc_scaled)

    # TODO(synk): training-mode BatchNorm also updates running_mean/running_var
    # buffers; not produced here (forward output only).
    return jnp.transpose(out2d.reshape(N, H, W, Cout), (0, 3, 1, 2))  # NCHW


# --------------------------------------------------------------------------
# References (pure JAX). conv_dtype=bf16 mirrors the kernel's MXU precision;
# conv_dtype=f32 is the exact f32 semantics of the PyTorch module.
# --------------------------------------------------------------------------
def _conv_ref(x, w, pad):
    return lax.conv_general_dilated(
        x, w, window_strides=(1, 1), padding=pad,
        dimension_numbers=("NHWC", "HWIO", "NHWC"),
        preferred_element_type=jnp.float32)


def _bn_ref(y, gamma, beta):
    m = jnp.mean(y, axis=(0, 1, 2))
    v = jnp.var(y, axis=(0, 1, 2))
    return (y - m) / jnp.sqrt(v + EPS) * gamma + beta


def residual_block_ref(x_nchw, params, conv_dtype=jnp.float32):
    (w1, g1, b1, w2, g2, b2, wsc, gsc, bsc) = params
    x = jnp.transpose(x_nchw, (0, 2, 3, 1)).astype(jnp.float32)
    xc = x.astype(conv_dtype)
    y1 = _conv_ref(xc, w1.astype(conv_dtype), ((1, 1), (1, 1)))
    h1 = jax.nn.relu(_bn_ref(y1, g1, b1)).astype(conv_dtype)
    y2 = _conv_ref(h1, w2.astype(conv_dtype), ((1, 1), (1, 1)))
    Cin, Cout = wsc.shape
    ysc = _conv_ref(xc, wsc.reshape(1, 1, Cin, Cout).astype(conv_dtype),
                    ((0, 0), (0, 0)))
    out = jax.nn.relu(_bn_ref(y2, g2, b2) + _bn_ref(ysc, gsc, bsc))
    return jnp.transpose(out, (0, 3, 1, 2))


# --------------------------------------------------------------------------
if __name__ == "__main__":
    N, Cin, H, W = 2, 4, 16, 16
    Cout = 8

    key = jax.random.PRNGKey(0)
    k1, k2, k3, kx = jax.random.split(key, 4)

    # deterministic parameter init (shapes from the module's __init__)
    w1 = jax.random.normal(k1, (3, 3, Cin, Cout), jnp.float32) * 0.1
    w2 = jax.random.normal(k2, (3, 3, Cout, Cout), jnp.float32) * 0.1
    wsc = jax.random.normal(k3, (Cin, Cout), jnp.float32) * 0.1
    g1 = jnp.ones((Cout,), jnp.float32); b1 = jnp.zeros((Cout,), jnp.float32)
    g2 = jnp.ones((Cout,), jnp.float32); b2 = jnp.zeros((Cout,), jnp.float32)
    gsc = jnp.ones((Cout,), jnp.float32); bsc = jnp.zeros((Cout,), jnp.float32)
    params = (w1, g1, b1, w2, g2, b2, wsc, gsc, bsc)

    x = jax.random.normal(kx, (N, Cin, H, W), jnp.float32)   # NCHW like torch

    out = jax.jit(residual_block_pallas)(x, params)
    out = jax.block_until_ready(out)
    assert out.shape == (N, Cout, H, W)

    # precision-matched reference (bf16 MXU operands, f32 accumulation);
    # tolerance allows ~1 ulp of extra bf16 rounding at the y1/y2 inter-pass
    # boundaries and the BN_sc-folded shortcut weights.
    ref_bf16 = residual_block_ref(x, params, jnp.bfloat16)
    err = float(jnp.max(jnp.abs(out - ref_bf16)))
    assert jnp.allclose(out, ref_bf16, atol=3e-2, rtol=3e-2), err

    # sanity check vs. the exact f32 PyTorch-module semantics
    ref_f32 = residual_block_ref(x, params, jnp.float32)
    err32 = float(jnp.max(jnp.abs(out - ref_f32)))
    assert jnp.allclose(out, ref_f32, atol=1e-1, rtol=1e-1), err32

    print("KERNEL_OK")
</pallas_src>

<mosaic_0001>
module attributes {stable_mosaic.version = 11 : i64} {
  func.func @kernel_a(%arg0: i32, %arg1: memref<16x64xbf16, #tpu.memory_space<vmem>>, %arg2: memref<3x64x128xbf16, #tpu.memory_space<vmem>>, %arg3: memref<64x128xbf16, #tpu.memory_space<vmem>>, %arg4: memref<16x128xbf16, #tpu.memory_space<vmem>>, %arg5: memref<1x4x128xf32, #tpu.memory_space<vmem>>, %arg6: memref<18x64xbf16, #tpu.memory_space<vmem>>) attributes {dimension_semantics = [#tpu.dimension_semantics<parallel>], iteration_bounds = array<i64: 2>, scalar_prefetch = 0 : i64, scratch_operands = 1 : i64, tpu.core_type = #tpu.core_type<tc>, window_params = [{transform_indices = @transform_0, window_bounds = array<i64: 16, 64>}, {pipeline_mode = #tpu.pipeline_mode<synchronous>, transform_indices = @transform_1, window_bounds = array<i64: 3, 64, 128>}, {pipeline_mode = #tpu.pipeline_mode<synchronous>, transform_indices = @transform_2, window_bounds = array<i64: 64, 128>}, {transform_indices = @transform_3, window_bounds = array<i64: 16, 128>}, {transform_indices = @transform_4, window_bounds = array<i64: 1, 4, 128>}]} {
    %cst = arith.constant 0.000000e+00 : bf16
    %0 = vector.broadcast %cst : bf16 to vector<1x64xbf16>
    %c0 = arith.constant 0 : index
    %c0_0 = arith.constant 0 : index
    %1 = vector.load %arg1[%c0, %c0_0] : memref<16x64xbf16, #tpu.memory_space<vmem>>, vector<16x64xbf16>
    %c0_1 = arith.constant 0 : index
    %c0_2 = arith.constant 0 : index
    %2 = vector.load %arg6[%c0_1, %c0_2] : memref<18x64xbf16, #tpu.memory_space<vmem>>, vector<1x64xbf16>
    tpu.vector_store %arg6[%c0_1, %c0_2], %0 {strides = array<i32>} : memref<18x64xbf16, #tpu.memory_space<vmem>>, vector<1x64xbf16>,
    %c1 = arith.constant 1 : index
    %c0_3 = arith.constant 0 : index
    %3 = vector.load %arg6[%c1, %c0_3] : memref<18x64xbf16, #tpu.memory_space<vmem>>, vector<16x64xbf16>
    tpu.vector_store %arg6[%c1, %c0_3], %1 {strides = array<i32>} : memref<18x64xbf16, #tpu.memory_space<vmem>>, vector<16x64xbf16>,
    %c17 = arith.constant 17 : index
    %c0_4 = arith.constant 0 : index
    %4 = vector.load %arg6[%c17, %c0_4] : memref<18x64xbf16, #tpu.memory_space<vmem>>, vector<1x64xbf16>
    tpu.vector_store %arg6[%c17, %c0_4], %0 {strides = array<i32>} : memref<18x64xbf16, #tpu.memory_space<vmem>>, vector<1x64xbf16>,
    %c0_5 = arith.constant 0 : index
    %c0_6 = arith.constant 0 : index
    %5 = vector.load %arg6[%c0_5, %c0_6] : memref<18x64xbf16, #tpu.memory_space<vmem>>, vector<16x64xbf16>
    %c0_7 = arith.constant 0 : index
    %c0_8 = arith.constant 0 : index
    %c0_9 = arith.constant 0 : index
    %6 = vector.load %arg2[%c0_7, %c0_8, %c0_9] : memref<3x64x128xbf16, #tpu.memory_space<vmem>>, vector<1x64x128xbf16>
    %7 = vector.shape_cast %6 : vector<1x64x128xbf16> to vector<64x128xbf16>
    %cst_10 = arith.constant dense<0.000000e+00> : vector<16x128xf32>
    %8 = tpu.matmul %5, %7, %cst_10 {dimension_numbers = #tpu.dot_dimension_numbers<[1], [0], [0], [1], [0, 0, 1, 1], [], []>} : vector<16x64xbf16>, vector<64x128xbf16>, vector<16x128xf32> -> vector<16x128xf32>
    %c1_11 = arith.constant 1 : index
    %c0_12 = arith.constant 0 : index
    %9 = vector.load %arg6[%c1_11, %c0_12] : memref<18x64xbf16, #tpu.memory_space<vmem>>, vector<16x64xbf16>
    %c1_13 = arith.constant 1 : index
    %c0_14 = arith.constant 0 : index
    %c0_15 = arith.constant 0 : index
    %10 = vector.load %arg2[%c1_13, %c0_14, %c0_15] : memref<3x64x128xbf16, #tpu.memory_space<vmem>>, vector<1x64x128xbf16>
    %11 = vector.shape_cast %10 : vector<1x64x128xbf16> to vector<64x128xbf16>
    %cst_16 = arith.constant dense<0.000000e+00> : vector<16x128xf32>
    %12 = tpu.matmul %9, %11, %cst_16 {dimension_numbers = #tpu.dot_dimension_numbers<[1], [0], [0], [1], [0, 0, 1, 1], [], []>} : vector<16x64xbf16>, vector<64x128xbf16>, vector<16x128xf32> -> vector<16x128xf32>
    %13 = arith.addf %8, %12 : vector<16x128xf32>
    %c2 = arith.constant 2 : index
    %c0_17 = arith.constant 0 : index
    %14 = vector.load %arg6[%c2, %c0_17] : memref<18x64xbf16, #tpu.memory_space<vmem>>, vector<16x64xbf16>
    %c2_18 = arith.constant 2 : index
    %c0_19 = arith.constant 0 : index
    %c0_20 = arith.constant 0 : index
    %15 = vector.load %arg2[%c2_18, %c0_19, %c0_20] : memref<3x64x128xbf16, #tpu.memory_space<vmem>>, vector<1x64x128xbf16>
    %16 = vector.shape_cast %15 : vector<1x64x128xbf16> to vector<64x128xbf16>
    %cst_21 = arith.constant dense<0.000000e+00> : vector<16x128xf32>
    %17 = tpu.matmul %14, %16, %cst_21 {dimension_numbers = #tpu.dot_dimension_numbers<[1], [0], [0], [1], [0, 0, 1, 1], [], []>} : vector<16x64xbf16>, vector<64x128xbf16>, vector<16x128xf32> -> vector<16x128xf32>
    %18 = arith.addf %13, %17 : vector<16x128xf32>
    %c0_22 = arith.constant 0 : index
    %c0_23 = arith.constant 0 : index
    %19 = vector.load %arg3[%c0_22, %c0_23] : memref<64x128xbf16, #tpu.memory_space<vmem>>, vector<64x128xbf16>
    %cst_24 = arith.constant dense<0.000000e+00> : vector<16x128xf32>
    %20 = tpu.matmul %1, %19, %cst_24 {dimension_numbers = #tpu.dot_dimension_numbers<[1], [0], [0], [1], [0, 0, 1, 1], [], []>} : vector<16x64xbf16>, vector<64x128xbf16>, vector<16x128xf32> -> vector<16x128xf32>
    %cst_25 = arith.constant 0.000000e+00 : f32
    %21 = vector.broadcast %cst_25 : f32 to vector<1x128xf32>
    %cst_26 = arith.constant 0.000000e+00 : f32
    %22 = vector.broadcast %cst_26 : f32 to vector<1x128xf32>
    %23 = arith.truncf %18 : vector<16x128xf32> to vector<16x128xbf16>
    %c0_27 = arith.constant 0 : index
    %c0_28 = arith.constant 0 : index
    %24 = vector.load %arg4[%c0_27, %c0_28] : memref<16x128xbf16, #tpu.memory_space<vmem>>, vector<16x128xbf16>
    tpu.vector_store %arg4[%c0_27, %c0_28], %23 {strides = array<i32>} : memref<16x128xbf16, #tpu.memory_space<vmem>>, vector<16x128xbf16>,
    %cst_29 = arith.constant dense<0.000000e+00> : vector<128xf32>
    %25 = vector.multi_reduction <add>, %18, %cst_29 [0] : vector<16x128xf32> to vector<128xf32>
    %26 = vector.shape_cast %25 : vector<128xf32> to vector<1x128xf32>
    %27 = arith.addf %21, %26 : vector<1x128xf32>
    %28 = arith.mulf %18, %18 : vector<16x128xf32>
    %cst_30 = arith.constant dense<0.000000e+00> : vector<128xf32>
    %29 = vector.multi_reduction <add>, %28, %cst_30 [0] : vector<16x128xf32> to vector<128xf32>
    %30 = vector.shape_cast %29 : vector<128xf32> to vector<1x128xf32>
    %31 = arith.addf %22, %30 : vector<1x128xf32>
    %cst_31 = arith.constant dense<0.000000e+00> : vector<128xf32>
    %32 = vector.multi_reduction <add>, %20, %cst_31 [0] : vector<16x128xf32> to vector<128xf32>
    %33 = vector.shape_cast %32 : vector<128xf32> to vector<1x128xf32>
    %34 = arith.mulf %20, %20 : vector<16x128xf32>
    %cst_32 = arith.constant dense<0.000000e+00> : vector<128xf32>
    %35 = vector.multi_reduction <add>, %34, %cst_32 [0] : vector<16x128xf32> to vector<128xf32>
    %36 = vector.shape_cast %35 : vector<128xf32> to vector<1x128xf32>
    %37 = tpu.concatenate %27, %31, %33, %36 in 0 : vector<1x128xf32>, vector<1x128xf32>, vector<1x128xf32>, vector<1x128xf32> -> vector<4x128xf32>
    %c0_33 = arith.constant 0 : index
    %c0_34 = arith.constant 0 : index
    %c0_35 = arith.constant 0 : index
    %38 = vector.load %arg5[%c0_33, %c0_34, %c0_35] : memref<1x4x128xf32, #tpu.memory_space<vmem>>, vector<1x4x128xf32>
    %39 = vector.shape_cast %38 : vector<1x4x128xf32> to vector<4x128xf32>
    %40 = vector.shape_cast %37 : vector<4x128xf32> to vector<1x4x128xf32>
    tpu.vector_store %arg5[%c0_33, %c0_34, %c0_35], %40 {strides = array<i32>} : memref<1x4x128xf32, #tpu.memory_space<vmem>>, vector<1x4x128xf32>,
    return
  }
  func.func @transform_0(%arg0: i32) -> (i32, i32) {
    %c0_i32 = arith.constant 0 : i32
    %c0_i32_0 = arith.constant 0 : i32
    return %arg0, %c0_i32 : i32, i32
  }
  func.func @transform_1(%arg0: i32) -> (i32, i32, i32) {
    %c0_i32 = arith.constant 0 : i32
    %c0_i32_0 = arith.constant 0 : i32
    %c0_i32_1 = arith.constant 0 : i32
    %c0_i32_2 = arith.constant 0 : i32
    return %c0_i32, %c0_i32_0, %c0_i32_1 : i32, i32, i32
  }
  func.func @transform_2(%arg0: i32) -> (i32, i32) {
    %c0_i32 = arith.constant 0 : i32
    %c0_i32_0 = arith.constant 0 : i32
    %c0_i32_1 = arith.constant 0 : i32
    return %c0_i32, %c0_i32_0 : i32, i32
  }
  func.func @transform_3(%arg0: i32) -> (i32, i32) {
    %c0_i32 = arith.constant 0 : i32
    %c0_i32_0 = arith.constant 0 : i32
    return %arg0, %c0_i32 : i32, i32
  }
  func.func @transform_4(%arg0: i32) -> (i32, i32, i32) {
    %c0_i32 = arith.constant 0 : i32
    %c0_i32_0 = arith.constant 0 : i32
    %c0_i32_1 = arith.constant 0 : i32
    return %arg0, %c0_i32, %c0_i32_0 : i32, i32, i32
  }
}

module attributes {stable_mosaic.version = 11 : i64} {
  func.func @kernel_b(%arg0: i32, %arg1: memref<16x128xbf16, #tpu.memory_space<vmem>>, %arg2: memref<2x128xf32, #tpu.memory_space<vmem>>, %arg3: memref<3x128x128xbf16, #tpu.memory_space<vmem>>, %arg4: memref<16x128xbf16, #tpu.memory_space<vmem>>, %arg5: memref<1x2x128xf32, #tpu.memory_space<vmem>>, %arg6: memref<18x128xbf16, #tpu.memory_space<vmem>>) attributes {dimension_semantics = [#tpu.dimension_semantics<parallel>], iteration_bounds = array<i64: 2>, scalar_prefetch = 0 : i64, scratch_operands = 1 : i64, tpu.core_type = #tpu.core_type<tc>, window_params = [{transform_indices = @transform_0, window_bounds = array<i64: 16, 128>}, {pipeline_mode = #tpu.pipeline_mode<synchronous>, transform_indices = @transform_1, window_bounds = array<i64: 2, 128>}, {pipeline_mode = #tpu.pipeline_mode<synchronous>, transform_indices = @transform_2, window_bounds = array<i64: 3, 128, 128>}, {transform_indices = @transform_3, window_bounds = array<i64: 16, 128>}, {transform_indices = @transform_4, window_bounds = array<i64: 1, 2, 128>}]} {
    %c0 = arith.constant 0 : index
    %c0_0 = arith.constant 0 : index
    %0 = vector.load %arg2[%c0, %c0_0] : memref<2x128xf32, #tpu.memory_space<vmem>>, vector<1x128xf32>
    %c1 = arith.constant 1 : index
    %c0_1 = arith.constant 0 : index
    %1 = vector.load %arg2[%c1, %c0_1] : memref<2x128xf32, #tpu.memory_space<vmem>>, vector<1x128xf32>
    %cst = arith.constant 0.000000e+00 : bf16
    %2 = vector.broadcast %cst : bf16 to vector<1x128xbf16>
    %c0_2 = arith.constant 0 : index
    %c0_3 = arith.constant 0 : index
    %3 = vector.load %arg1[%c0_2, %c0_3] : memref<16x128xbf16, #tpu.memory_space<vmem>>, vector<16x128xbf16>
    %4 = arith.extf %3 : vector<16x128xbf16> to vector<16x128xf32>
    %5 = vector.broadcast %0 : vector<1x128xf32> to vector<16x128xf32>
    %6 = arith.mulf %4, %5 : vector<16x128xf32>
    %7 = vector.broadcast %1 : vector<1x128xf32> to vector<16x128xf32>
    %8 = arith.addf %6, %7 : vector<16x128xf32>
    %cst_4 = arith.constant 0.000000e+00 : f32
    %9 = vector.broadcast %cst_4 : f32 to vector<16x128xf32>
    %10 = arith.maximumf %8, %9 : vector<16x128xf32>
    %c0_5 = arith.constant 0 : index
    %c0_6 = arith.constant 0 : index
    %11 = vector.load %arg6[%c0_5, %c0_6] : memref<18x128xbf16, #tpu.memory_space<vmem>>, vector<1x128xbf16>
    tpu.vector_store %arg6[%c0_5, %c0_6], %2 {strides = array<i32>} : memref<18x128xbf16, #tpu.memory_space<vmem>>, vector<1x128xbf16>,
    %12 = arith.truncf %10 : vector<16x128xf32> to vector<16x128xbf16>
    %c1_7 = arith.constant 1 : index
    %c0_8 = arith.constant 0 : index
    %13 = vector.load %arg6[%c1_7, %c0_8] : memref<18x128xbf16, #tpu.memory_space<vmem>>, vector<16x128xbf16>
    tpu.vector_store %arg6[%c1_7, %c0_8], %12 {strides = array<i32>} : memref<18x128xbf16, #tpu.memory_space<vmem>>, vector<16x128xbf16>,
    %c17 = arith.constant 17 : index
    %c0_9 = arith.constant 0 : index
    %14 = vector.load %arg6[%c17, %c0_9] : memref<18x128xbf16, #tpu.memory_space<vmem>>, vector<1x128xbf16>
    tpu.vector_store %arg6[%c17, %c0_9], %2 {strides = array<i32>} : memref<18x128xbf16, #tpu.memory_space<vmem>>, vector<1x128xbf16>,
    %c0_10 = arith.constant 0 : index
    %c0_11 = arith.constant 0 : index
    %15 = vector.load %arg6[%c0_10, %c0_11] : memref<18x128xbf16, #tpu.memory_space<vmem>>, vector<16x128xbf16>
    %c0_12 = arith.constant 0 : index
    %c0_13 = arith.constant 0 : index
    %c0_14 = arith.constant 0 : index
    %16 = vector.load %arg3[%c0_12, %c0_13, %c0_14] : memref<3x128x128xbf16, #tpu.memory_space<vmem>>, vector<1x128x128xbf16>
    %17 = vector.shape_cast %16 : vector<1x128x128xbf16> to vector<128x128xbf16>
    %cst_15 = arith.constant dense<0.000000e+00> : vector<16x128xf32>
    %18 = tpu.matmul %15, %17, %cst_15 {dimension_numbers = #tpu.dot_dimension_numbers<[1], [0], [0], [1], [0, 0, 1, 1], [], []>} : vector<16x128xbf16>, vector<128x128xbf16>, vector<16x128xf32> -> vector<16x128xf32>
    %c1_16 = arith.constant 1 : index
    %c0_17 = arith.constant 0 : index
    %19 = vector.load %arg6[%c1_16, %c0_17] : memref<18x128xbf16, #tpu.memory_space<vmem>>, vector<16x128xbf16>
    %c1_18 = arith.constant 1 : index
    %c0_19 = arith.constant 0 : index
    %c0_20 = arith.constant 0 : index
    %20 = vector.load %arg3[%c1_18, %c0_19, %c0_20] : memref<3x128x128xbf16, #tpu.memory_space<vmem>>, vector<1x128x128xbf16>
    %21 = vector.shape_cast %20 : vector<1x128x128xbf16> to vector<128x128xbf16>
    %cst_21 = arith.constant dense<0.000000e+00> : vector<16x128xf32>
    %22 = tpu.matmul %19, %21, %cst_21 {dimension_numbers = #tpu.dot_dimension_numbers<[1], [0], [0], [1], [0, 0, 1, 1], [], []>} : vector<16x128xbf16>, vector<128x128xbf16>, vector<16x128xf32> -> vector<16x128xf32>
    %23 = arith.addf %18, %22 : vector<16x128xf32>
    %c2 = arith.constant 2 : index
    %c0_22 = arith.constant 0 : index
    %24 = vector.load %arg6[%c2, %c0_22] : memref<18x128xbf16, #tpu.memory_space<vmem>>, vector<16x128xbf16>
    %c2_23 = arith.constant 2 : index
    %c0_24 = arith.constant 0 : index
    %c0_25 = arith.constant 0 : index
    %25 = vector.load %arg3[%c2_23, %c0_24, %c0_25] : memref<3x128x128xbf16, #tpu.memory_space<vmem>>, vector<1x128x128xbf16>
    %26 = vector.shape_cast %25 : vector<1x128x128xbf16> to vector<128x128xbf16>
    %cst_26 = arith.constant dense<0.000000e+00> : vector<16x128xf32>
    %27 = tpu.matmul %24, %26, %cst_26 {dimension_numbers = #tpu.dot_dimension_numbers<[1], [0], [0], [1], [0, 0, 1, 1], [], []>} : vector<16x128xbf16>, vector<128x128xbf16>, vector<16x128xf32> -> vector<16x128xf32>
    %28 = arith.addf %23, %27 : vector<16x128xf32>
    %cst_27 = arith.constant 0.000000e+00 : f32
    %29 = vector.broadcast %cst_27 : f32 to vector<1x128xf32>
    %cst_28 = arith.constant 0.000000e+00 : f32
    %30 = vector.broadcast %cst_28 : f32 to vector<1x128xf32>
    %31 = arith.truncf %28 : vector<16x128xf32> to vector<16x128xbf16>
    %c0_29 = arith.constant 0 : index
    %c0_30 = arith.constant 0 : index
    %32 = vector.load %arg4[%c0_29, %c0_30] : memref<16x128xbf16, #tpu.memory_space<vmem>>, vector<16x128xbf16>
    tpu.vector_store %arg4[%c0_29, %c0_30], %31 {strides = array<i32>} : memref<16x128xbf16, #tpu.memory_space<vmem>>, vector<16x128xbf16>,
    %cst_31 = arith.constant dense<0.000000e+00> : vector<128xf32>
    %33 = vector.multi_reduction <add>, %28, %cst_31 [0] : vector<16x128xf32> to vector<128xf32>
    %34 = vector.shape_cast %33 : vector<128xf32> to vector<1x128xf32>
    %35 = arith.addf %29, %34 : vector<1x128xf32>
    %36 = arith.mulf %28, %28 : vector<16x128xf32>
    %cst_32 = arith.constant dense<0.000000e+00> : vector<128xf32>
    %37 = vector.multi_reduction <add>, %36, %cst_32 [0] : vector<16x128xf32> to vector<128xf32>
    %38 = vector.shape_cast %37 : vector<128xf32> to vector<1x128xf32>
    %39 = arith.addf %30, %38 : vector<1x128xf32>
    %40 = tpu.concatenate %35, %39 in 0 : vector<1x128xf32>, vector<1x128xf32> -> vector<2x128xf32>
    %c0_33 = arith.constant 0 : index
    %c0_34 = arith.constant 0 : index
    %c0_35 = arith.constant 0 : index
    %41 = vector.load %arg5[%c0_33, %c0_34, %c0_35] : memref<1x2x128xf32, #tpu.memory_space<vmem>>, vector<1x2x128xf32>
    %42 = vector.shape_cast %41 : vector<1x2x128xf32> to vector<2x128xf32>
    %43 = vector.shape_cast %40 : vector<2x128xf32> to vector<1x2x128xf32>
    tpu.vector_store %arg5[%c0_33, %c0_34, %c0_35], %43 {strides = array<i32>} : memref<1x2x128xf32, #tpu.memory_space<vmem>>, vector<1x2x128xf32>,
    return
  }
  func.func @transform_0(%arg0: i32) -> (i32, i32) {
    %c0_i32 = arith.constant 0 : i32
    %c0_i32_0 = arith.constant 0 : i32
    return %arg0, %c0_i32 : i32, i32
  }
  func.func @transform_1(%arg0: i32) -> (i32, i32) {
    %c0_i32 = arith.constant 0 : i32
    %c0_i32_0 = arith.constant 0 : i32
    %c0_i32_1 = arith.constant 0 : i32
    return %c0_i32, %c0_i32_0 : i32, i32
  }
  func.func @transform_2(%arg0: i32) -> (i32, i32, i32) {
    %c0_i32 = arith.constant 0 : i32
    %c0_i32_0 = arith.constant 0 : i32
    %c0_i32_1 = arith.constant 0 : i32
    %c0_i32_2 = arith.constant 0 : i32
    return %c0_i32, %c0_i32_0, %c0_i32_1 : i32, i32, i32
  }
  func.func @transform_3(%arg0: i32) -> (i32, i32) {
    %c0_i32 = arith.constant 0 : i32
    %c0_i32_0 = arith.constant 0 : i32
    return %arg0, %c0_i32 : i32, i32
  }
  func.func @transform_4(%arg0: i32) -> (i32, i32, i32) {
    %c0_i32 = arith.constant 0 : i32
    %c0_i32_0 = arith.constant 0 : i32
    %c0_i32_1 = arith.constant 0 : i32
    return %arg0, %c0_i32, %c0_i32_0 : i32, i32, i32
  }
}

module attributes {stable_mosaic.version = 11 : i64} {
  func.func @kernel_c(%arg0: i32, %arg1: memref<16x128xbf16, #tpu.memory_space<vmem>>, %arg2: memref<16x64xbf16, #tpu.memory_space<vmem>>, %arg3: memref<3x128xf32, #tpu.memory_space<vmem>>, %arg4: memref<64x128xbf16, #tpu.memory_space<vmem>>, %arg5: memref<16x128xf32, #tpu.memory_space<vmem>>) attributes {dimension_semantics = [#tpu.dimension_semantics<parallel>], iteration_bounds = array<i64: 2>, scalar_prefetch = 0 : i64, scratch_operands = 0 : i64, tpu.core_type = #tpu.core_type<tc>, window_params = [{transform_indices = @transform_0, window_bounds = array<i64: 16, 128>}, {transform_indices = @transform_1, window_bounds = array<i64: 16, 64>}, {pipeline_mode = #tpu.pipeline_mode<synchronous>, transform_indices = @transform_2, window_bounds = array<i64: 3, 128>}, {pipeline_mode = #tpu.pipeline_mode<synchronous>, transform_indices = @transform_3, window_bounds = array<i64: 64, 128>}, {transform_indices = @transform_4, window_bounds = array<i64: 16, 128>}]} {
    %c0 = arith.constant 0 : index
    %c0_0 = arith.constant 0 : index
    %0 = vector.load %arg3[%c0, %c0_0] : memref<3x128xf32, #tpu.memory_space<vmem>>, vector<1x128xf32>
    %c1 = arith.constant 1 : index
    %c0_1 = arith.constant 0 : index
    %1 = vector.load %arg3[%c1, %c0_1] : memref<3x128xf32, #tpu.memory_space<vmem>>, vector<1x128xf32>
    %c2 = arith.constant 2 : index
    %c0_2 = arith.constant 0 : index
    %2 = vector.load %arg3[%c2, %c0_2] : memref<3x128xf32, #tpu.memory_space<vmem>>, vector<1x128xf32>
    %c0_3 = arith.constant 0 : index
    %c0_4 = arith.constant 0 : index
    %3 = vector.load %arg2[%c0_3, %c0_4] : memref<16x64xbf16, #tpu.memory_space<vmem>>, vector<16x64xbf16>
    %c0_5 = arith.constant 0 : index
    %c0_6 = arith.constant 0 : index
    %4 = vector.load %arg4[%c0_5, %c0_6] : memref<64x128xbf16, #tpu.memory_space<vmem>>, vector<64x128xbf16>
    %cst = arith.constant dense<0.000000e+00> : vector<16x128xf32>
    %5 = tpu.matmul %3, %4, %cst {dimension_numbers = #tpu.dot_dimension_numbers<[1], [0], [0], [1], [0, 0, 1, 1], [], []>} : vector<16x64xbf16>, vector<64x128xbf16>, vector<16x128xf32> -> vector<16x128xf32>
    %c0_7 = arith.constant 0 : index
    %c0_8 = arith.constant 0 : index
    %6 = vector.load %arg1[%c0_7, %c0_8] : memref<16x128xbf16, #tpu.memory_space<vmem>>, vector<16x128xbf16>
    %7 = arith.extf %6 : vector<16x128xbf16> to vector<16x128xf32>
    %8 = vector.broadcast %0 : vector<1x128xf32> to vector<16x128xf32>
    %9 = arith.mulf %7, %8 : vector<16x128xf32>
    %10 = vector.broadcast %1 : vector<1x128xf32> to vector<16x128xf32>
    %11 = arith.addf %9, %10 : vector<16x128xf32>
    %12 = arith.addf %11, %5 : vector<16x128xf32>
    %13 = vector.broadcast %2 : vector<1x128xf32> to vector<16x128xf32>
    %14 = arith.addf %12, %13 : vector<16x128xf32>
    %cst_9 = arith.constant 0.000000e+00 : f32
    %15 = vector.broadcast %cst_9 : f32 to vector<16x128xf32>
    %16 = arith.maximumf %14, %15 : vector<16x128xf32>
    %c0_10 = arith.constant 0 : index
    %c0_11 = arith.constant 0 : index
    %17 = vector.load %arg5[%c0_10, %c0_11] : memref<16x128xf32, #tpu.memory_space<vmem>>, vector<16x128xf32>
    tpu.vector_store %arg5[%c0_10, %c0_11], %16 {strides = array<i32>} : memref<16x128xf32, #tpu.memory_space<vmem>>, vector<16x128xf32>,
    return
  }
  func.func @transform_0(%arg0: i32) -> (i32, i32) {
    %c0_i32 = arith.constant 0 : i32
    %c0_i32_0 = arith.constant 0 : i32
    return %arg0, %c0_i32 : i32, i32
  }
  func.func @transform_1(%arg0: i32) -> (i32, i32) {
    %c0_i32 = arith.constant 0 : i32
    %c0_i32_0 = arith.constant 0 : i32
    return %arg0, %c0_i32 : i32, i32
  }
  func.func @transform_2(%arg0: i32) -> (i32, i32) {
    %c0_i32 = arith.constant 0 : i32
    %c0_i32_0 = arith.constant 0 : i32
    %c0_i32_1 = arith.constant 0 : i32
    return %c0_i32, %c0_i32_0 : i32, i32
  }
  func.func @transform_3(%arg0: i32) -> (i32, i32) {
    %c0_i32 = arith.constant 0 : i32
    %c0_i32_0 = arith.constant 0 : i32
    %c0_i32_1 = arith.constant 0 : i32
    return %c0_i32, %c0_i32_0 : i32, i32
  }
  func.func @transform_4(%arg0: i32) -> (i32, i32) {
    %c0_i32 = arith.constant 0 : i32
    %c0_i32_0 = arith.constant 0 : i32
    return %arg0, %c0_i32 : i32, i32
  }
}

</mosaic_0001>

<llo_original>
// kernel: tile.33
$region0: #{tile.33}
  #allocation0 [shape = 's32[1]{0}', space=sflag, size = 0x4, scoped, tag = 'scoped memory for tile.33']
  %s0 = inlined_call_operand.vmem [shape: f32[8], index: 0, kind: input, shape index: {}]
  %s1 = inlined_call_operand.vmem [shape: f32[16,8], index: 1, kind: output, shape index: {}]
  // Predicated region
  $region2: #{tile.33} parent=0 // pred_check
    _
  $region3: #{tile.33} parent=0 // pred_check_branch
    %3 = sbr.rel (0) target = $region5
  $region4: #{tile.33} parent=0 // pred_region
    _
  $region5: #{tile.33} parent=0 // pred_fallthru
    _
  %v4 = vld [vmem:[%s0] ss:$0 sm:$0xff]
  %5 = vst [vmem:[%s1] sm:$0xff] %v4
  %s6 = scalar_lea.vmem %s1, 8
  %7 = vst [vmem:[%s6] sm:$0xff] %v4

// kernel: tile.38
$region0: #{tile.38}
  %s0 = inlined_call_operand.vmem [shape: f32[16,8], index: 0, kind: input, shape index: {}]
  %s1 = inlined_call_operand.vmem [shape: f32[1,128], index: 1, kind: output, shape index: {}]
  $region1: #{tile.38} parent=0
    #allocation0 [shape = 'u8[4096]{0}', space=vmem, size = 0x1000, scoped, tag = 'scoped mem for output reshape']
    %v2 = vld [vmem:[%s0] sm:$0x1]
    %vm3 = vcmask 64512
    %4 = vst.msk [vmem:[#allocation0] sm:$0x1] %vm3, %v2
    %s5 = scalar_lea.vmem %s0, 15
    %v6 = vld [vmem:[%s5] sm:$0x1]
    %7 = vrot.lane.b32.xlu0 %v6, 120
    %v8 = vpop.permute.xlu0 %7
    %vm9 = vcmask 1048512
    %10 = vst.msk [vmem:[#allocation0] sm:$0x1] %vm9, %v8
    %s11 = scalar_lea.vmem %s0, 14
    %v12 = vld [vmem:[%s11] sm:$0x1]
    %13 = vrot.lane.b32.xlu0 %v12, 112
    %v14 = vpop.permute.xlu0 %13
    %vm15 = vcmask 982912
    %16 = vst.msk [vmem:[#allocation0] sm:$0x1] %vm15, %v14
    %s17 = scalar_lea.vmem %s0, 13
    %v18 = vld [vmem:[%s17] sm:$0x1]
    %19 = vrot.lane.b32.xlu0 %v18, 104
    %v20 = vpop.permute.xlu0 %19
    %vm21 = vcmask 917312
    %22 = vst.msk [vmem:[#allocation0] sm:$0x1] %vm21, %v20
    %s23 = scalar_lea.vmem %s0, 12
    %v24 = vld [vmem:[%s23] sm:$0x1]
    %25 = vrot.lane.b32.xlu0 %v24, 96
    %v26 = vpop.permute.xlu0 %25
    %vm27 = vcmask 851712
    %28 = vst.msk [vmem:[#allocation0] sm:$0x1] %vm27, %v26
    %s29 = scalar_lea.vmem %s0, 11
    %v30 = vld [vmem:[%s29] sm:$0x1]
    %31 = vrot.lane.b32.xlu0 %v30, 88
    %v32 = vpop.permute.xlu0 %31
    %vm33 = vcmask 786112
    %34 = vst.msk [vmem:[#allocation0] sm:$0x1] %vm33, %v32
    %s35 = scalar_lea.vmem %s0, 10
    %v36 = vld [vmem:[%s35] sm:$0x1]
    %37 = vrot.lane.b32.xlu0 %v36, 80
    %v38 = vpop.permute.xlu0 %37
    %vm39 = vcmask 720512
    %40 = vst.msk [vmem:[#allocation0] sm:$0x1] %vm39, %v38
    %s41 = scalar_lea.vmem %s0, 9
    %v42 = vld [vmem:[%s41] sm:$0x1]
    %43 = vrot.lane.b32.xlu0 %v42, 72
    %v44 = vpop.permute.xlu0 %43
    %vm45 = vcmask 654912
    %46 = vst.msk [vmem:[#allocation0] sm:$0x1] %vm45, %v44
    %s47 = scalar_lea.vmem %s0, 8
    %v48 = vld [vmem:[%s47] sm:$0x1]
    %49 = vrot.lane.b32.xlu0 %v48, 64
    %v50 = vpop.permute.xlu0 %49
    %vm51 = vcmask 589312
    %52 = vst.msk [vmem:[#allocation0] sm:$0x1] %vm51, %v50
    %s53 = scalar_lea.vmem %s0, 7
    %v54 = vld [vmem:[%s53] sm:$0x1]
    %55 = vrot.lane.b32.xlu0 %v54, 56
    %v56 = vpop.permute.xlu0 %55
    %vm57 = vcmask 523712
    %58 = vst.msk [vmem:[#allocation0] sm:$0x1] %vm57, %v56
    %s59 = scalar_lea.vmem %s0, 6
    %v60 = vld [vmem:[%s59] sm:$0x1]
    %61 = vrot.lane.b32.xlu0 %v60, 48
    %v62 = vpop.permute.xlu0 %61
    %vm63 = vcmask 458112
    %64 = vst.msk [vmem:[#allocation0] sm:$0x1] %vm63, %v62
    %s65 = scalar_lea.vmem %s0, 5
    %v66 = vld [vmem:[%s65] sm:$0x1]
    %67 = vrot.lane.b32.xlu0 %v66, 40
    %v68 = vpop.permute.xlu0 %67
    %vm69 = vcmask 392512
    %70 = vst.msk [vmem:[#allocation0] sm:$0x1] %vm69, %v68
    %s71 = scalar_lea.vmem %s0, 4
    %v72 = vld [vmem:[%s71] sm:$0x1]
    %73 = vrot.lane.b32.xlu0 %v72, 32
    %v74 = vpop.permute.xlu0 %73
    %vm75 = vcmask 326912
    %76 = vst.msk [vmem:[#allocation0] sm:$0x1] %vm75, %v74
    %s77 = scalar_lea.vmem %s0, 3
    %v78 = vld [vmem:[%s77] sm:$0x1]
    %79 = vrot.lane.b32.xlu0 %v78, 24
    %v80 = vpop.permute.xlu0 %79
    %vm81 = vcmask 261312
    %82 = vst.msk [vmem:[#allocation0] sm:$0x1] %vm81, %v80
    %s83 = scalar_lea.vmem %s0, 2
    %v84 = vld [vmem:[%s83] sm:$0x1]
    %85 = vrot.lane.b32.xlu0 %v84, 16
    %v86 = vpop.permute.xlu0 %85
    %vm87 = vcmask 195712
    %88 = vst.msk [vmem:[#allocation0] sm:$0x1] %vm87, %v86
    %s89 = scalar_lea.vmem %s0, 1
    %v90 = vld [vmem:[%s89] sm:$0x1]
    %91 = vrot.lane.b32.xlu0 %v90, 8
    %v92 = vpop.permute.xlu0 %91
    %vm93 = vcmask 130112
    %94 = vst.msk [vmem:[#allocation0] sm:$0x1] %vm93, %v92
    %s96 = ssub.s32 2, 1
    %v97 = vld [vmem:[#allocation0] sm:%s96]
    %s99 = ssub.s32 2, 1
    %100 = vst [vmem:[%s1] sm:%s99] %v97

// kernel: mul.45
$region0: #{mul.45}
  %s0 = inlined_call_operand.vmem [shape: f32[16,8], index: 0, kind: input, shape index: {}]
  %s1 = inlined_call_operand.vmem [shape: f32[128], index: 1, kind: output, shape index: {}]
  $region1: #{mul.45} parent=0
    #allocation0 [shape = 'u8[4096]{0}', space=vmem, size = 0x1000, scoped, tag = 'scoped mem for output reshape']
    %v2 = vld [vmem:[%s0] sm:$0x1]
    %vm3 = vcmask 64512
    %4 = vst.msk [vmem:[#allocation0] sm:$0x1] %vm3, %v2
    %s5 = scalar_lea.vmem %s0, 15
    %v6 = vld [vmem:[%s5] sm:$0x1]
    %7 = vrot.lane.b32.xlu0 %v6, 120
    %v8 = vpop.permute.xlu0 %7
    %vm9 = vcmask 1048512
    %10 = vst.msk [vmem:[#allocation0] sm:$0x1] %vm9, %v8
    %s11 = scalar_lea.vmem %s0, 14
    %v12 = vld [vmem:[%s11] sm:$0x1]
    %13 = vrot.lane.b32.xlu0 %v12, 112
    %v14 = vpop.permute.xlu0 %13
    %vm15 = vcmask 982912
    %16 = vst.msk [vmem:[#allocation0] sm:$0x1] %vm15, %v14
    %s17 = scalar_lea.vmem %s0, 13
    %v18 = vld [vmem:[%s17] sm:$0x1]
    %19 = vrot.lane.b32.xlu0 %v18, 104
    %v20 = vpop.permute.xlu0 %19
    %vm21 = vcmask 917312
    %22 = vst.msk [vmem:[#allocation0] sm:$0x1] %vm21, %v20
    %s23 = scalar_lea.vmem %s0, 12
    %v24 = vld [vmem:[%s23] sm:$0x1]
    %25 = vrot.lane.b32.xlu0 %v24, 96
    %v26 = vpop.permute.xlu0 %25
    %vm27 = vcmask 851712
    %28 = vst.msk [vmem:[#allocation0] sm:$0x1] %vm27, %v26
    %s29 = scalar_lea.vmem %s0, 11
    %v30 = vld [vmem:[%s29] sm:$0x1]
    %31 = vrot.lane.b32.xlu0 %v30, 88
    %v32 = vpop.permute.xlu0 %31
    %vm33 = vcmask 786112
    %34 = vst.msk [vmem:[#allocation0] sm:$0x1] %vm33, %v32
    %s35 = scalar_lea.vmem %s0, 10
    %v36 = vld [vmem:[%s35] sm:$0x1]
    %37 = vrot.lane.b32.xlu0 %v36, 80
    %v38 = vpop.permute.xlu0 %37
    %vm39 = vcmask 720512
    %40 = vst.msk [vmem:[#allocation0] sm:$0x1] %vm39, %v38
    %s41 = scalar_lea.vmem %s0, 9
    %v42 = vld [vmem:[%s41] sm:$0x1]
    %43 = vrot.lane.b32.xlu0 %v42, 72
    %v44 = vpop.permute.xlu0 %43
    %vm45 = vcmask 654912
    %46 = vst.msk [vmem:[#allocation0] sm:$0x1] %vm45, %v44
    %s47 = scalar_lea.vmem %s0, 8
    %v48 = vld [vmem:[%s47] sm:$0x1]
    %49 = vrot.lane.b32.xlu0 %v48, 64
    %v50 = vpop.permute.xlu0 %49
    %vm51 = vcmask 589312
    %52 = vst.msk [vmem:[#allocation0] sm:$0x1] %vm51, %v50
    %s53 = scalar_lea.vmem %s0, 7
    %v54 = vld [vmem:[%s53] sm:$0x1]
    %55 = vrot.lane.b32.xlu0 %v54, 56
    %v56 = vpop.permute.xlu0 %55
    %vm57 = vcmask 523712
    %58 = vst.msk [vmem:[#allocation0] sm:$0x1] %vm57, %v56
    %s59 = scalar_lea.vmem %s0, 6
    %v60 = vld [vmem:[%s59] sm:$0x1]
    %61 = vrot.lane.b32.xlu0 %v60, 48
    %v62 = vpop.permute.xlu0 %61
    %vm63 = vcmask 458112
    %64 = vst.msk [vmem:[#allocation0] sm:$0x1] %vm63, %v62
    %s65 = scalar_lea.vmem %s0, 5
    %v66 = vld [vmem:[%s65] sm:$0x1]
    %67 = vrot.lane.b32.xlu0 %v66, 40
    %v68 = vpop.permute.xlu0 %67
    %vm69 = vcmask 392512
    %70 = vst.msk [vmem:[#allocation0] sm:$0x1] %vm69, %v68
    %s71 = scalar_lea.vmem %s0, 4
    %v72 = vld [vmem:[%s71] sm:$0x1]
    %73 = vrot.lane.b32.xlu0 %v72, 32
    %v74 = vpop.permute.xlu0 %73
    %vm75 = vcmask 326912
    %76 = vst.msk [vmem:[#allocation0] sm:$0x1] %vm75, %v74
    %s77 = scalar_lea.vmem %s0, 3
    %v78 = vld [vmem:[%s77] sm:$0x1]
    %79 = vrot.lane.b32.xlu0 %v78, 24
    %v80 = vpop.permute.xlu0 %79
    %vm81 = vcmask 261312
    %82 = vst.msk [vmem:[#allocation0] sm:$0x1] %vm81, %v80
    %s83 = scalar_lea.vmem %s0, 2
    %v84 = vld [vmem:[%s83] sm:$0x1]
    %85 = vrot.lane.b32.xlu0 %v84, 16
    %v86 = vpop.permute.xlu0 %85
    %vm87 = vcmask 195712
    %88 = vst.msk [vmem:[#allocation0] sm:$0x1] %vm87, %v86
    %s89 = scalar_lea.vmem %s0, 1
    %v90 = vld [vmem:[%s89] sm:$0x1]
    %91 = vrot.lane.b32.xlu0 %v90, 8
    %v92 = vpop.permute.xlu0 %91
    %vm93 = vcmask 130112
    %94 = vst.msk [vmem:[#allocation0] sm:$0x1] %vm93, %v92
    %s96 = ssub.s32 2, 1
    %v97 = vld [vmem:[#allocation0] sm:%s96]
    %s99 = ssub.s32 2, 1
    %100 = vst [vmem:[%s1] sm:%s99] %v97

// kernel: residual_block_pallas.3
$region0: #{residual_block_pallas.3}
  #allocation0 [shape = 'u32[]', space=smem, size = 0x4, offset = 0x4, fixed_abs, tag = 'smem constant byte address 0x4 - core index']
  #allocation1 [shape = 'u32[72,128]{1,0:T(1,128)}', space=vmem, size = 0x9000, scoped, tag = 'internal scratch']
  #allocation2 [shape = 'bf16[18,64]{1,0:T(8,128)(2,1)}', space=vmem, size = 0x1800, scoped, tag = 'scratch operand']
  %s0 = inlined_call_operand.vmem [shape: bf16[32,64], index: 0, kind: input, shape index: {}]
  %s1 = inlined_call_operand.vmem [shape: bf16[3,64,128], index: 1, kind: input, shape index: {}]
  %s2 = inlined_call_operand.vmem [shape: bf16[64,128], index: 2, kind: input, shape index: {}]
  %s3 = inlined_call_operand.vmem [shape: bf16[32,128], index: 3, kind: output, shape index: {0}]
  %s4 = inlined_call_operand.vmem [shape: f32[2,4,128], index: 4, kind: output, shape index: {1}]
  %5 = xla_tuple %s3, %s4
  %s6 = sld [smem:[#allocation0]]
  $region53: #{residual_block_pallas.3} parent=0
    _
  %s8 = ssub.s32 1, %s6
  %s9 = scalar_select 0, %s8, %s6
  loop: start=0, step=1, limit=4
  $region2: #{residual_block_pallas.3} parent=0 // loop_pre_header
    _
  $region3: #{residual_block_pallas.3} parent=0 // loop_header
    %s11 = sphi 0, %s15
    %p12 = scmp.ge.s32.totalorder %s11, 4
    %s21 = sphi 0, %s23
    %s24 = sphi 0, %s21
    %s25 = sphi 0, %s24
    %s41 = sphi 0, %s25
    %s45 = sphi 0, %s45
    %s47 = sphi 0, %s45
    %s48 = sphi 0, %s47
    %s62 = sphi 0, %s48
    %s66 = sphi 0, %s66
    %s68 = sphi 0, %s66
    %s69 = sphi 0, %s68
    %s83 = sphi 0, %s69
    %s89 = sphi 0, %s91
    %s92 = sphi 0, %s89
    %s93 = sphi 0, %s92
    %s109 = sphi 0, %s93
    %s115 = sphi 0, %s117
    %s118 = sphi 0, %s115
    %s119 = sphi 0, %s118
    %s135 = sphi 0, %s119
  $region4: #{residual_block_pallas.3} parent=0 // loop_header_branch
    %14 = sbr.rel (%p12) target = $region8
  $region5: #{residual_block_pallas.3} parent=0 // loop_body
    %s16 = ssub.s32 %s11, 1
    %s17 = ssub.s32 %s11, 2
    %s18 = sadd.s32 %s11, 1
    %s19 = ssub.s32 %s11, %s18
    %p20 = scmp.eq.s32.totalorder %s19, 0
    %s22 = sadd.s32 %s21, 1
    %s23 = scalar_select %p20, %s21, %s22
    %p26 = pneg %p20
    %p27 = scmp.eq.s32.totalorder %s11, 1
    %p28 = por %p26, %p27
    %p29 = scmp.ne.s32.totalorder %s21, %s24
    %p30 = scmp.eq.s32.totalorder %s11, 0
    %p31 = por %p29, %p30
    %p32 = scmp.ne.s32.totalorder %s21, %s24
    %p33 = scmp.eq.s32.totalorder %s16, 1
    %p34 = por %p32, %p33
    %p35 = scmp.ne.s32.totalorder %s24, %s25
    %p36 = scmp.eq.s32.totalorder %s16, 0
    %p37 = por %p35, %p36
    %p38 = scmp.ne.s32.totalorder %s24, %s25
    %p39 = scmp.eq.s32.totalorder %s17, 1
    %p40 = por %p38, %p39
    %p42 = scmp.ne.s32.totalorder %s25, %s41
    %p43 = scmp.eq.s32.totalorder %s17, 0
    %p44 = por %p42, %p43
    %s46 = sadd.s32 %s45, 1
    %p49 = scmp.eq.s32.totalorder %s11, 1
    %p50 = scmp.ne.s32.totalorder %s45, %s47
    %p51 = scmp.eq.s32.totalorder %s11, 0
    %p52 = por %p50, %p51
    %p53 = scmp.ne.s32.totalorder %s45, %s47
    %p54 = scmp.eq.s32.totalorder %s16, 1
    %p55 = por %p53, %p54
    %p56 = scmp.ne.s32.totalorder %s47, %s48
    %p57 = scmp.eq.s32.totalorder %s16, 0
    %p58 = por %p56, %p57
    %p59 = scmp.ne.s32.totalorder %s47, %s48
    %p60 = scmp.eq.s32.totalorder %s17, 1
    %p61 = por %p59, %p60
    %p63 = scmp.ne.s32.totalorder %s48, %s62
    %p64 = scmp.eq.s32.totalorder %s17, 0
    %p65 = por %p63, %p64
    %s67 = sadd.s32 %s66, 1
    %p70 = scmp.eq.s32.totalorder %s11, 1
    %p71 = scmp.ne.s32.totalorder %s66, %s68
    %p72 = scmp.eq.s32.totalorder %s11, 0
    %p73 = por %p71, %p72
    %p74 = scmp.ne.s32.totalorder %s66, %s68
    %p75 = scmp.eq.s32.totalorder %s16, 1
    %p76 = por %p74, %p75
    %p77 = scmp.ne.s32.totalorder %s68, %s69
    %p78 = scmp.eq.s32.totalorder %s16, 0
    %p79 = por %p77, %p78
    %p80 = scmp.ne.s32.totalorder %s68, %s69
    %p81 = scmp.eq.s32.totalorder %s17, 1
    %p82 = por %p80, %p81
    %p84 = scmp.ne.s32.totalorder %s69, %s83
    %p85 = scmp.eq.s32.totalorder %s17, 0
    %p86 = por %p84, %p85
    %s87 = ssub.s32 %s11, %s18
    %p88 = scmp.eq.s32.totalorder %s87, 0
    %s90 = sadd.s32 %s89, 1
    %s91 = scalar_select %p88, %s89, %s90
    %p94 = pneg %p88
    %p95 = scmp.eq.s32.totalorder %s11, 1
    %p96 = por %p94, %p95
    %p97 = scmp.ne.s32.totalorder %s89, %s92
    %p98 = scmp.eq.s32.totalorder %s11, 0
    %p99 = por %p97, %p98
    %p100 = scmp.ne.s32.totalorder %s89, %s92
    %p101 = scmp.eq.s32.totalorder %s16, 1
    %p102 = por %p100, %p101
    %p103 = scmp.ne.s32.totalorder %s92, %s93
    %p104 = scmp.eq.s32.totalorder %s16, 0
    %p105 = por %p103, %p104
    %p106 = scmp.ne.s32.totalorder %s92, %s93
    %p107 = scmp.eq.s32.totalorder %s17, 1
    %p108 = por %p106, %p107
    %p110 = scmp.ne.s32.totalorder %s93, %s109
    %p111 = scmp.eq.s32.totalorder %s17, 0
    %p112 = por %p110, %p111
    %s113 = ssub.s32 %s11, %s18
    %p114 = scmp.eq.s32.totalorder %s113, 0
    %s116 = sadd.s32 %s115, 1
    %s117 = scalar_select %p114, %s115, %s116
    %p120 = pneg %p114
    %p121 = scmp.eq.s32.totalorder %s11, 1
    %p122 = por %p120, %p121
    %p123 = scmp.ne.s32.totalorder %s115, %s118
    %p124 = scmp.eq.s32.totalorder %s11, 0
    %p125 = por %p123, %p124
    %p126 = scmp.ne.s32.totalorder %s115, %s118
    %p127 = scmp.eq.s32.totalorder %s16, 1
    %p128 = por %p126, %p127
    %p129 = scmp.ne.s32.totalorder %s118, %s119
    %p130 = scmp.eq.s32.totalorder %s16, 0
    %p131 = por %p129, %p130
    %p132 = scmp.ne.s32.totalorder %s118, %s119
    %p133 = scmp.eq.s32.totalorder %s17, 1
    %p134 = por %p132, %p133
    %p136 = scmp.ne.s32.totalorder %s119, %s135
    %p137 = scmp.eq.s32.totalorder %s17, 0
    %p138 = por %p136, %p137
    %p139 = scmp.le.s32.totalorder 1, %s11
    %p140 = scmp.lt.s32.totalorder %s11, 3
    %p141 = pnand %p139, %p140
    %p142 = pneg %p141
    // Predicated region
    $region9: #{residual_block_pallas.3} parent=5 // pred_check
      _
    $region10: #{residual_block_pallas.3} parent=5 // pred_check_branch
      %144 = sbr.rel (%p141) target = $region12
    $region11: #{residual_block_pallas.3} parent=5 // pred_region
      %s145 = ssub.s32 %s11, 1
      // Predicated region
      $region13: #{residual_block_pallas.3} parent=11 // pred_check
        %p146 = pneg %p58
      $region14: #{residual_block_pallas.3} parent=11 // pred_check_branch
        %148 = sbr.rel (%p146) target = $region16
      $region15: #{residual_block_pallas.3} parent=11 // pred_region
        _
      $region16: #{residual_block_pallas.3} parent=11 // pred_fallthru
        _
      // Predicated region
      $region17: #{residual_block_pallas.3} parent=11 // pred_check
        %p149 = pneg %p79
      $region18: #{residual_block_pallas.3} parent=11 // pred_check_branch
        %151 = sbr.rel (%p149) target = $region20
      $region19: #{residual_block_pallas.3} parent=11 // pred_region
        _
      $region20: #{residual_block_pallas.3} parent=11 // pred_fallthru
        _
    $region12: #{residual_block_pallas.3} parent=5 // pred_fallthru
      _
    %p152 = scmp.lt.s32.totalorder %s11, 2
    // Predicated region
    $region21: #{residual_block_pallas.3} parent=5 // pred_check
      %p153 = pneg %p152
    $region22: #{residual_block_pallas.3} parent=5 // pred_check_branch
      %155 = sbr.rel (%p153) target = $region24
    $region23: #{residual_block_pallas.3} parent=5 // pred_region
      // Predicated region
      $region25: #{residual_block_pallas.3} parent=23 // pred_check
        %p156 = pneg %p31
      $region26: #{residual_block_pallas.3} parent=23 // pred_check_branch
        %158 = sbr.rel (%p156) target = $region28
      $region27: #{residual_block_pallas.3} parent=23 // pred_region
        %s159 = smul.u32 2, %s11
        %p160 = scmp.lt.s32.totalorder %s159, 3
        %s161 = scalar_select %p160, %s159, 3
        %s162 = smul.addr %s161, 4
        %s163 = scalar_lea.vmem %s0, %s162
        %s164 = smul.u32 2, %s11
      $region28: #{residual_block_pallas.3} parent=23 // pred_fallthru
        _
    $region24: #{residual_block_pallas.3} parent=5 // pred_fallthru
      _
    %p165 = scmp.le.s32.totalorder 1, %s11
    %p166 = scmp.lt.s32.totalorder %s11, 3
    %p167 = pnand %p165, %p166
    %p168 = pneg %p167
    // Predicated region
    $region29: #{residual_block_pallas.3} parent=5 // pred_check
      _
    $region30: #{residual_block_pallas.3} parent=5 // pred_check_branch
      %170 = sbr.rel (%p167) target = $region32
    $region31: #{residual_block_pallas.3} parent=5 // pred_region
      %s171 = ssub.s32 %s11, 1
      %s172 = smul.u32 2, %s16
      %p173 = scmp.lt.s32.totalorder %s172, 3
      %s174 = scalar_select %p173, %s172, 3
      %s175 = smul.addr %s174, 4
      %s176 = scalar_lea.vmem %s0, %s175
      %p177 = pneg %p37
      %p178 = pneg %p34
      %p179 = pneg %p58
      %p180 = pneg %p55
      %p181 = pneg %p79
      %p182 = pneg %p76
      %p183 = pneg %p105
      %p184 = pneg %p102
      %s185 = smul.u32 2, %s16
      %p186 = scmp.lt.s32.totalorder %s185, 3
      %s187 = scalar_select %p186, %s185, 3
      %s188 = smul.addr %s187, 4
      %s189 = scalar_lea.vmem %s3, %s188
      %p190 = pneg %p131
      %p191 = pneg %p128
      %p192 = scmp.lt.s32.totalorder %s16, 1
      %s193 = scalar_select %p192, %s16, 1
      %s194 = smul.addr %s193, 4
      %s195 = scalar_lea.vmem %s4, %s194
      %s196 = smul.u32 2, %s16
      %p197 = scmp.lt.s32.totalorder %s196, 3
      %s198 = scalar_select %p197, %s196, 3
      %s199 = smul.addr %s198, 4
      %s200 = scalar_lea.vmem %s0, %s199
      %s201 = smul.u32 2, %s16
      %s202 = smul.u32 2, %s16
      %p203 = scmp.lt.s32.totalorder %s202, 3
      %s204 = scalar_select %p203, %s202, 3
      %s205 = smul.addr %s204, 4
      %s206 = scalar_lea.vmem %s3, %s205
      %s207 = smul.u32 2, %s16
      %p208 = scmp.lt.s32.totalorder %s16, 1
      %s209 = scalar_select %p208, %s16, 1
      %s210 = smul.addr %s209, 4
      %s211 = scalar_lea.vmem %s4, %s210
      %v213 = vld [vmem:[%s200] sm:$0xf]
      %v214 = vld [vmem:[%s200 + $0x4] sm:$0xf]
      %vm215 = vcmask 516096
      %vm216 = vsmask.f32 256
      %vm217 = vmand %vm215, %vm216
      %v218 = vld [vmem:[#allocation2] sm:$0x1]
      %v219 = vsel %vm217, 0, %v218
      %220 = vst [vmem:[#allocation2] sm:$0x1] %v219
      %vm221 = vsmask.f32 4368
      %vm222 = vmor %vm216, %vm221
      %v224 = vshrl.u32 %v213, 16
      %v226 = vrot.slane %v224, 7
      %v227 = vshll.u32 %v213, 16
      %v229 = vor.u32 %v226, %v227
      %v230 = vrot.slane %v226, 4
      %v232 = vshrl.u32 %v214, 16
      %v234 = vrot.slane %v232, 7
      %v235 = vshll.u32 %v214, 16
      %v237 = vor.u32 %v234, %v235
      %v238 = vsel %vm222, %v230, %v237
      %v239 = vrot.slane %v234, 4
      %vm243 = vcmask 519168
      %vm244 = vsmask.f32 7938
      %vm245 = vmand %vm243, %vm244
      %v246 = vld [vmem:[#allocation2] sm:$0xf]
      %v247 = vsel %vm245, %v229, %v246
      %248 = vst [vmem:[#allocation2] sm:$0xf] %v247
      %vm249 = vcmask 519168
      %250 = vst.msk [vmem:[#allocation2 + $0x4] sm:$0xf] %vm249, %v238
      %v251 = vld [vmem:[#allocation2 + $0x8] sm:$0x1]
      %v252 = vsel %vm217, %v239, %v251
      %253 = vst [vmem:[#allocation2 + $0x8] sm:$0x1] %v252
      %vm254 = vmand %vm215, %vm244
      %v255 = vld [vmem:[#allocation2 + $0x8] sm:$0x1]
      %v256 = vsel %vm254, 0, %v255
      %257 = vst [vmem:[#allocation2 + $0x8] sm:$0x1] %v256
      %v258 = vld [vmem:[#allocation2] sm:$0xf]
      %v259 = vld [vmem:[#allocation2 + $0x4] sm:$0xf]
      %v260 = vld [vmem:[%s1] sm:$0xf]
      %v261 = vld [vmem:[%s1 + $0x4] sm:$0xf]
      %v262 = vld [vmem:[%s1 + $0x8] sm:$0xf]
      %v263 = vld [vmem:[%s1 + $0xc] sm:$0xf]
      %v264 = vld [vmem:[%s1 + $0x10] sm:$0xf]
      %v265 = vld [vmem:[%s1 + $0x14] sm:$0xf]
      %v266 = vld [vmem:[%s1 + $0x18] sm:$0xf]
      %v267 = vld [vmem:[%s1 + $0x1c] sm:$0xf]
      %v268 = vld [vmem:[#allocation2 + $0x8] sm:$0x1]
      %s269 = scalar_lea.vmem %s1, 32
      %v270 = vld [vmem:[%s269] sm:$0xf]
      %v271 = vld [vmem:[%s269 + $0x4] sm:$0xf]
      %v272 = vld [vmem:[%s269 + $0x8] sm:$0xf]
      %v273 = vld [vmem:[%s269 + $0xc] sm:$0xf]
      %v274 = vld [vmem:[%s269 + $0x10] sm:$0xf]
      %v275 = vld [vmem:[%s269 + $0x14] sm:$0xf]
      %v276 = vld [vmem:[%s269 + $0x18] sm:$0xf]
      %v277 = vld [vmem:[%s269 + $0x1c] sm:$0xf]
      %v281 = vunpack.c.l.b16 %v258
      %v282 = vunpack.c.l.b16 %v259
      %v283 = vunpack.c.l.b16 %v268
      %v284 = vpack.c.b16 %v282, %v281
      %v285 = vpack.c.b16 %v283, %v283
      %vm286 = vsmask.f32 7424
      %v288 = vshrl.u32 %v284, 16
      %v290 = vshll.u32 %v284, 16
      %v292 = vrot.slane %v290, 1
      %v293 = vor.u32 %v288, %v292
      %v295 = vshll.u32 %v285, 16
      %v297 = vrot.slane %v295, 1
      %v298 = vsel %vm286, %v293, %v297
      %v307 = vunpack.c.l.b16 %v270
      %v308 = vunpack.c.l.b16 %v271
      %v309 = vunpack.c.l.b16 %v272
      %v310 = vunpack.c.l.b16 %v273
      %v311 = vunpack.c.l.b16 %v274
      %v312 = vunpack.c.l.b16 %v275
      %v313 = vunpack.c.l.b16 %v276
      %v314 = vunpack.c.l.b16 %v277
      %v315 = vpack.c.b16 %v308, %v307
      %v316 = vpack.c.b16 %v310, %v309
      %v317 = vpack.c.b16 %v312, %v311
      %v318 = vpack.c.b16 %v314, %v313
      %vm323 = vcmask 523264
      %v325 = vsel %vm323, %v298, 0
      %327 = vmatpush.bf16.msra.mxu0 0
      %328 = vmatpush.bf16.msra.mxu0 0
      %329 = vmatpush.bf16.msra.mxu0 0
      %330 = vmatpush.bf16.msra.mxu0 0
      %331 = vmatpush.bf16.msra.mxu0 %v318
      %332 = vmatpush.bf16.msra.mxu0 %v317
      %333 = vmatpush.bf16.msra.mxu0 %v316
      %334 = vmatpush.bf16.msra.mxu0 %v315
      %335 = vmatmul.bf16.gmra.mxu0 %v325
      %v336 = vpop.f32.mrf.mxu0
      %v337 = vadd.f32 0.0, %v336
      %v338 = vpop.f32.mrf.mxu0
      %v339 = vadd.f32 0.0, %v338
      %340 = vdwg.mxu0
      %v349 = vunpack.c.l.b16 %v260
      %v350 = vunpack.c.l.b16 %v261
      %v351 = vunpack.c.l.b16 %v262
      %v352 = vunpack.c.l.b16 %v263
      %v353 = vunpack.c.l.b16 %v264
      %v354 = vunpack.c.l.b16 %v265
      %v355 = vunpack.c.l.b16 %v266
      %v356 = vunpack.c.l.b16 %v267
      %v357 = vpack.c.b16 %v350, %v349
      %v358 = vpack.c.b16 %v352, %v351
      %v359 = vpack.c.b16 %v354, %v353
      %v360 = vpack.c.b16 %v356, %v355
      %v365 = vsel %vm323, %v284, 0
      %367 = vmatpush.bf16.msra.mxu0 0
      %368 = vmatpush.bf16.msra.mxu0 0
      %369 = vmatpush.bf16.msra.mxu0 0
      %370 = vmatpush.bf16.msra.mxu0 0
      %371 = vmatpush.bf16.msra.mxu0 %v360
      %372 = vmatpush.bf16.msra.mxu0 %v359
      %373 = vmatpush.bf16.msra.mxu0 %v358
      %374 = vmatpush.bf16.msra.mxu0 %v357
      %375 = vmatmul.bf16.gmra.mxu0 %v365
      %v376 = vpop.f32.mrf.mxu0
      %v377 = vadd.f32 %v337, %v376
      %v378 = vpop.f32.mrf.mxu0
      %v379 = vadd.f32 %v339, %v378
      %380 = vdwg.mxu0
      %v381 = vld [vmem:[#allocation2] sm:$0xe]
      %s382 = scalar_lea.vmem %s1, 64
      %v383 = vld [vmem:[%s382] sm:$0xf]
      %v384 = vld [vmem:[%s382 + $0x4] sm:$0xf]
      %v385 = vld [vmem:[%s382 + $0x8] sm:$0xf]
      %v386 = vld [vmem:[%s382 + $0xc] sm:$0xf]
      %v387 = vld [vmem:[%s382 + $0x10] sm:$0xf]
      %v388 = vld [vmem:[%s382 + $0x14] sm:$0xf]
      %v389 = vld [vmem:[%s382 + $0x18] sm:$0xf]
      %v390 = vld [vmem:[%s382 + $0x1c] sm:$0xf]
      %v392 = vunpack.c.l.b16 %v381
      %v393 = vpack.c.b16 %v282, %v392
      %vm394 = vcmask 1046528
      %v395 = vrot.slane %v393, 1
      %v396 = vrot.slane %v285, 1
      %v397 = vsel %vm394, %v395, %v396
      %v406 = vunpack.c.l.b16 %v383
      %v407 = vunpack.c.l.b16 %v384
      %v408 = vunpack.c.l.b16 %v385
      %v409 = vunpack.c.l.b16 %v386
      %v410 = vunpack.c.l.b16 %v387
      %v411 = vunpack.c.l.b16 %v388
      %v412 = vunpack.c.l.b16 %v389
      %v413 = vunpack.c.l.b16 %v390
      %v414 = vpack.c.b16 %v407, %v406
      %v415 = vpack.c.b16 %v409, %v408
      %v416 = vpack.c.b16 %v411, %v410
      %v417 = vpack.c.b16 %v413, %v412
      %v423 = vsel %vm323, %v397, 0
      %425 = vmatpush.bf16.msra.mxu0 0
      %426 = vmatpush.bf16.msra.mxu0 0
      %427 = vmatpush.bf16.msra.mxu0 0
      %428 = vmatpush.bf16.msra.mxu0 0
      %429 = vmatpush.bf16.msra.mxu0 %v417
      %430 = vmatpush.bf16.msra.mxu0 %v416
      %431 = vmatpush.bf16.msra.mxu0 %v415
      %432 = vmatpush.bf16.msra.mxu0 %v414
      %433 = vmatmul.bf16.gmra.mxu0 %v423
      %v434 = vpop.f32.mrf.mxu0
      %v435 = vadd.f32 0.0, %v434
      %v436 = vpop.f32.mrf.mxu0
      %v437 = vadd.f32 0.0, %v436
      %438 = vdwg.mxu0
      %v439 = vadd.f32 %v377, %v435
      %v440 = vadd.f32 %v379, %v437
      %v441 = vld [vmem:[%s2] sm:$0xf]
      %v442 = vld [vmem:[%s2 + $0x4] sm:$0xf]
      %v443 = vld [vmem:[%s2 + $0x8] sm:$0xf]
      %v444 = vld [vmem:[%s2 + $0xc] sm:$0xf]
      %v445 = vld [vmem:[%s2 + $0x10] sm:$0xf]
      %v446 = vld [vmem:[%s2 + $0x14] sm:$0xf]
      %v447 = vld [vmem:[%s2 + $0x18] sm:$0xf]
      %v448 = vld [vmem:[%s2 + $0x1c] sm:$0xf]
      %v451 = vunpack.c.l.b16 %v213
      %v452 = vunpack.c.l.b16 %v214
      %v453 = vpack.c.b16 %v452, %v451
      %v462 = vunpack.c.l.b16 %v441
      %v463 = vunpack.c.l.b16 %v442
      %v464 = vunpack.c.l.b16 %v443
      %v465 = vunpack.c.l.b16 %v444
      %v466 = vunpack.c.l.b16 %v445
      %v467 = vunpack.c.l.b16 %v446
      %v468 = vunpack.c.l.b16 %v447
      %v469 = vunpack.c.l.b16 %v448
      %v470 = vpack.c.b16 %v463, %v462
      %v471 = vpack.c.b16 %v465, %v464
      %v472 = vpack.c.b16 %v467, %v466
      %v473 = vpack.c.b16 %v469, %v468
      %v479 = vsel %vm323, %v453, 0
      %481 = vmatpush.bf16.msra.mxu0 0
      %482 = vmatpush.bf16.msra.mxu0 0
      %483 = vmatpush.bf16.msra.mxu0 0
      %484 = vmatpush.bf16.msra.mxu0 0
      %485 = vmatpush.bf16.msra.mxu0 %v473
      %486 = vmatpush.bf16.msra.mxu0 %v472
      %487 = vmatpush.bf16.msra.mxu0 %v471
      %488 = vmatpush.bf16.msra.mxu0 %v470
      %489 = vmatmul.bf16.gmra.mxu0 %v479
      %v490 = vpop.f32.mrf.mxu0
      %v491 = vadd.f32 0.0, %v490
      %v492 = vpop.f32.mrf.mxu0
      %v493 = vadd.f32 0.0, %v492
      %494 = vdwg.mxu0
      %v495 = vpack.c.bf16 %v439, %v439
      %v496 = vpack.c.bf16 %v440, %v440
      %497 = vst [vmem:[%s206] sm:$0xf] %v495
      %498 = vst [vmem:[%s206 + $0x4] sm:$0xf] %v496
      %v499 = vadd.f32 %v439, %v440
      %v500 = vrot.slane %v499, 4
      %v501 = vadd.f32 %v499, %v500
      %v502 = vrot.slane %v501, 2
      %v503 = vadd.f32 %v501, %v502
      %v504 = vrot.slane %v503, 1
      %v505 = vadd.f32 %v503, %v504
      %v506 = vadd.f32 %v505, 0.0
      %v507 = vmul.f32 %v439, %v439
      %v508 = vmul.f32 %v440, %v440
      %v509 = vadd.f32 %v507, %v508
      %v510 = vrot.slane %v509, 4
      %v511 = vadd.f32 %v509, %v510
      %v512 = vrot.slane %v511, 2
      %v513 = vadd.f32 %v511, %v512
      %v514 = vrot.slane %v513, 1
      %v515 = vadd.f32 %v513, %v514
      %v516 = vadd.f32 %v515, 0.0
      %v517 = vadd.f32 %v491, %v493
      %v518 = vrot.slane %v517, 4
      %v519 = vadd.f32 %v517, %v518
      %v520 = vrot.slane %v519, 2
      %v521 = vadd.f32 %v519, %v520
      %v522 = vrot.slane %v521, 1
      %v523 = vadd.f32 %v521, %v522
      %v524 = vmul.f32 %v491, %v491
      %v525 = vmul.f32 %v493, %v493
      %v526 = vadd.f32 %v524, %v525
      %v527 = vrot.slane %v526, 4
      %v528 = vadd.f32 %v526, %v527
      %v529 = vrot.slane %v528, 2
      %v530 = vadd.f32 %v528, %v529
      %v531 = vrot.slane %v530, 1
      %v532 = vadd.f32 %v530, %v531
      %vm533 = vcmask 1040384
      %v534 = vsel %vm533, %v506, %v516
      %vm535 = vcmask 1041408
      %v536 = vsel %vm535, %v534, %v523
      %vm537 = vcmask 1042432
      %v538 = vsel %vm537, %v536, %v532
      %539 = vst [vmem:[%s211] sm:$0xf] %v538
      %s540 = smul.u32 2, %s16
      %p541 = scmp.lt.s32.totalorder %s540, 3
      %s542 = scalar_select %p541, %s540, 3
      %s543 = smul.addr %s542, 4
      %s544 = scalar_lea.vmem %s3, %s543
      %p545 = scmp.lt.s32.totalorder %s16, 1
      %s546 = scalar_select %p545, %s16, 1
      %s547 = smul.addr %s546, 4
      %s548 = scalar_lea.vmem %s4, %s547
      // Predicated region
      $region33: #{residual_block_pallas.3} parent=31 // pred_check
        %p549 = pneg %p102
      $region34: #{residual_block_pallas.3} parent=31 // pred_check_branch
        %551 = sbr.rel (%p549) target = $region36
      $region35: #{residual_block_pallas.3} parent=31 // pred_region
        %s552 = smul.u32 2, %s16
      $region36: #{residual_block_pallas.3} parent=31 // pred_fallthru
        _
      // Predicated region
      $region37: #{residual_block_pallas.3} parent=31 // pred_check
        %p553 = pneg %p128
      $region38: #{residual_block_pallas.3} parent=31 // pred_check_branch
        %555 = sbr.rel (%p553) target = $region40
      $region39: #{residual_block_pallas.3} parent=31 // pred_region
        _
      $region40: #{residual_block_pallas.3} parent=31 // pred_fallthru
        _
    $region32: #{residual_block_pallas.3} parent=5 // pred_fallthru
      _
    %p556 = scmp.le.s32.totalorder 2, %s11
    // Predicated region
    $region41: #{residual_block_pallas.3} parent=5 // pred_check
      %p557 = pneg %p556
    $region42: #{residual_block_pallas.3} parent=5 // pred_check_branch
      %559 = sbr.rel (%p557) target = $region44
    $region43: #{residual_block_pallas.3} parent=5 // pred_region
      %s560 = ssub.s32 %s11, 2
      // Predicated region
      $region45: #{residual_block_pallas.3} parent=43 // pred_check
        %p561 = pneg %p108
      $region46: #{residual_block_pallas.3} parent=43 // pred_check_branch
        %563 = sbr.rel (%p561) target = $region48
      $region47: #{residual_block_pallas.3} parent=43 // pred_region
        %s564 = smul.u32 2, %s17
        %p565 = scmp.lt.s32.totalorder %s564, 3
        %s566 = scalar_select %p565, %s564, 3
        %s567 = smul.addr %s566, 4
        %s568 = scalar_lea.vmem %s3, %s567
      $region48: #{residual_block_pallas.3} parent=43 // pred_fallthru
        _
      // Predicated region
      $region49: #{residual_block_pallas.3} parent=43 // pred_check
        %p569 = pneg %p134
      $region50: #{residual_block_pallas.3} parent=43 // pred_check_branch
        %571 = sbr.rel (%p569) target = $region52
      $region51: #{residual_block_pallas.3} parent=43 // pred_region
        %p572 = scmp.lt.s32.totalorder %s17, 1
        %s573 = scalar_select %p572, %s17, 1
        %s574 = smul.addr %s573, 4
        %s575 = scalar_lea.vmem %s4, %s574
      $region52: #{residual_block_pallas.3} parent=43 // pred_fallthru
        _
    $region44: #{residual_block_pallas.3} parent=5 // pred_fallthru
      _
  $region6: #{residual_block_pallas.3} parent=0 // loop_footer
    %s15 = sadd.s32 1, %s11
  $region7: #{residual_block_pallas.3} parent=0 // loop_footer_branch
    %10 = sbr.rel target = $region3
  $region8: #{residual_block_pallas.3} parent=0 // loop_exit
    _

// kernel: residual_block_pallas.4
$region0: #{residual_block_pallas.4}
  #allocation0 [shape = 'u32[]', space=smem, size = 0x4, offset = 0x4, fixed_abs, tag = 'smem constant byte address 0x4 - core index']
  #allocation1 [shape = 'u32[72,128]{1,0:T(1,128)}', space=vmem, size = 0x9000, scoped, tag = 'internal scratch']
  #allocation2 [shape = 'bf16[18,128]{1,0:T(8,128)(2,1)}', space=vmem, size = 0x1800, scoped, tag = 'scratch operand']
  %s0 = inlined_call_operand.vmem [shape: bf16[32,128], index: 0, kind: input, shape index: {}]
  %s1 = inlined_call_operand.vmem [shape: f32[2,128], index: 1, kind: input, shape index: {}]
  %s2 = inlined_call_operand.vmem [shape: bf16[3,128,128], index: 2, kind: input, shape index: {}]
  %s3 = inlined_call_operand.vmem [shape: bf16[32,128], index: 3, kind: output, shape index: {0}]
  %s4 = inlined_call_operand.vmem [shape: f32[2,2,128], index: 4, kind: output, shape index: {1}]
  %5 = xla_tuple %s3, %s4
  %s6 = sld [smem:[#allocation0]]
  $region53: #{residual_block_pallas.4} parent=0
    _
  %s8 = ssub.s32 1, %s6
  %s9 = scalar_select 0, %s8, %s6
  loop: start=0, step=1, limit=4
  $region2: #{residual_block_pallas.4} parent=0 // loop_pre_header
    _
  $region3: #{residual_block_pallas.4} parent=0 // loop_header
    %s11 = sphi 0, %s15
    %p12 = scmp.ge.s32.totalorder %s11, 4
    %s21 = sphi 0, %s23
    %s24 = sphi 0, %s21
    %s25 = sphi 0, %s24
    %s41 = sphi 0, %s25
    %s45 = sphi 0, %s45
    %s47 = sphi 0, %s45
    %s48 = sphi 0, %s47
    %s62 = sphi 0, %s48
    %s66 = sphi 0, %s66
    %s68 = sphi 0, %s66
    %s69 = sphi 0, %s68
    %s83 = sphi 0, %s69
    %s89 = sphi 0, %s91
    %s92 = sphi 0, %s89
    %s93 = sphi 0, %s92
    %s109 = sphi 0, %s93
    %s115 = sphi 0, %s117
    %s118 = sphi 0, %s115
    %s119 = sphi 0, %s118
    %s135 = sphi 0, %s119
  $region4: #{residual_block_pallas.4} parent=0 // loop_header_branch
    %14 = sbr.rel (%p12) target = $region8
  $region5: #{residual_block_pallas.4} parent=0 // loop_body
    %s16 = ssub.s32 %s11, 1
    %s17 = ssub.s32 %s11, 2
    %s18 = sadd.s32 %s11, 1
    %s19 = ssub.s32 %s11, %s18
    %p20 = scmp.eq.s32.totalorder %s19, 0
    %s22 = sadd.s32 %s21, 1
    %s23 = scalar_select %p20, %s21, %s22
    %p26 = pneg %p20
    %p27 = scmp.eq.s32.totalorder %s11, 1
    %p28 = por %p26, %p27
    %p29 = scmp.ne.s32.totalorder %s21, %s24
    %p30 = scmp.eq.s32.totalorder %s11, 0
    %p31 = por %p29, %p30
    %p32 = scmp.ne.s32.totalorder %s21, %s24
    %p33 = scmp.eq.s32.totalorder %s16, 1
    %p34 = por %p32, %p33
    %p35 = scmp.ne.s32.totalorder %s24, %s25
    %p36 = scmp.eq.s32.totalorder %s16, 0
    %p37 = por %p35, %p36
    %p38 = scmp.ne.s32.totalorder %s24, %s25
    %p39 = scmp.eq.s32.totalorder %s17, 1
    %p40 = por %p38, %p39
    %p42 = scmp.ne.s32.totalorder %s25, %s41
    %p43 = scmp.eq.s32.totalorder %s17, 0
    %p44 = por %p42, %p43
    %s46 = sadd.s32 %s45, 1
    %p49 = scmp.eq.s32.totalorder %s11, 1
    %p50 = scmp.ne.s32.totalorder %s45, %s47
    %p51 = scmp.eq.s32.totalorder %s11, 0
    %p52 = por %p50, %p51
    %p53 = scmp.ne.s32.totalorder %s45, %s47
    %p54 = scmp.eq.s32.totalorder %s16, 1
    %p55 = por %p53, %p54
    %p56 = scmp.ne.s32.totalorder %s47, %s48
    %p57 = scmp.eq.s32.totalorder %s16, 0
    %p58 = por %p56, %p57
    %p59 = scmp.ne.s32.totalorder %s47, %s48
    %p60 = scmp.eq.s32.totalorder %s17, 1
    %p61 = por %p59, %p60
    %p63 = scmp.ne.s32.totalorder %s48, %s62
    %p64 = scmp.eq.s32.totalorder %s17, 0
    %p65 = por %p63, %p64
    %s67 = sadd.s32 %s66, 1
    %p70 = scmp.eq.s32.totalorder %s11, 1
    %p71 = scmp.ne.s32.totalorder %s66, %s68
    %p72 = scmp.eq.s32.totalorder %s11, 0
    %p73 = por %p71, %p72
    %p74 = scmp.ne.s32.totalorder %s66, %s68
    %p75 = scmp.eq.s32.totalorder %s16, 1
    %p76 = por %p74, %p75
    %p77 = scmp.ne.s32.totalorder %s68, %s69
    %p78 = scmp.eq.s32.totalorder %s16, 0
    %p79 = por %p77, %p78
    %p80 = scmp.ne.s32.totalorder %s68, %s69
    %p81 = scmp.eq.s32.totalorder %s17, 1
    %p82 = por %p80, %p81
    %p84 = scmp.ne.s32.totalorder %s69, %s83
    %p85 = scmp.eq.s32.totalorder %s17, 0
    %p86 = por %p84, %p85
    %s87 = ssub.s32 %s11, %s18
    %p88 = scmp.eq.s32.totalorder %s87, 0
    %s90 = sadd.s32 %s89, 1
    %s91 = scalar_select %p88, %s89, %s90
    %p94 = pneg %p88
    %p95 = scmp.eq.s32.totalorder %s11, 1
    %p96 = por %p94, %p95
    %p97 = scmp.ne.s32.totalorder %s89, %s92
    %p98 = scmp.eq.s32.totalorder %s11, 0
    %p99 = por %p97, %p98
    %p100 = scmp.ne.s32.totalorder %s89, %s92
    %p101 = scmp.eq.s32.totalorder %s16, 1
    %p102 = por %p100, %p101
    %p103 = scmp.ne.s32.totalorder %s92, %s93
    %p104 = scmp.eq.s32.totalorder %s16, 0
    %p105 = por %p103, %p104
    %p106 = scmp.ne.s32.totalorder %s92, %s93
    %p107 = scmp.eq.s32.totalorder %s17, 1
    %p108 = por %p106, %p107
    %p110 = scmp.ne.s32.totalorder %s93, %s109
    %p111 = scmp.eq.s32.totalorder %s17, 0
    %p112 = por %p110, %p111
    %s113 = ssub.s32 %s11, %s18
    %p114 = scmp.eq.s32.totalorder %s113, 0
    %s116 = sadd.s32 %s115, 1
    %s117 = scalar_select %p114, %s115, %s116
    %p120 = pneg %p114
    %p121 = scmp.eq.s32.totalorder %s11, 1
    %p122 = por %p120, %p121
    %p123 = scmp.ne.s32.totalorder %s115, %s118
    %p124 = scmp.eq.s32.totalorder %s11, 0
    %p125 = por %p123, %p124
    %p126 = scmp.ne.s32.totalorder %s115, %s118
    %p127 = scmp.eq.s32.totalorder %s16, 1
    %p128 = por %p126, %p127
    %p129 = scmp.ne.s32.totalorder %s118, %s119
    %p130 = scmp.eq.s32.totalorder %s16, 0
    %p131 = por %p129, %p130
    %p132 = scmp.ne.s32.totalorder %s118, %s119
    %p133 = scmp.eq.s32.totalorder %s17, 1
    %p134 = por %p132, %p133
    %p136 = scmp.ne.s32.totalorder %s119, %s135
    %p137 = scmp.eq.s32.totalorder %s17, 0
    %p138 = por %p136, %p137
    %p139 = scmp.le.s32.totalorder 1, %s11
    %p140 = scmp.lt.s32.totalorder %s11, 3
    %p141 = pnand %p139, %p140
    %p142 = pneg %p141
    // Predicated region
    $region9: #{residual_block_pallas.4} parent=5 // pred_check
      _
    $region10: #{residual_block_pallas.4} parent=5 // pred_check_branch
      %144 = sbr.rel (%p141) target = $region12
    $region11: #{residual_block_pallas.4} parent=5 // pred_region
      %s145 = ssub.s32 %s11, 1
      // Predicated region
      $region13: #{residual_block_pallas.4} parent=11 // pred_check
        %p146 = pneg %p58
      $region14: #{residual_block_pallas.4} parent=11 // pred_check_branch
        %148 = sbr.rel (%p146) target = $region16
      $region15: #{residual_block_pallas.4} parent=11 // pred_region
        _
      $region16: #{residual_block_pallas.4} parent=11 // pred_fallthru
        _
      // Predicated region
      $region17: #{residual_block_pallas.4} parent=11 // pred_check
        %p149 = pneg %p79
      $region18: #{residual_block_pallas.4} parent=11 // pred_check_branch
        %151 = sbr.rel (%p149) target = $region20
      $region19: #{residual_block_pallas.4} parent=11 // pred_region
        _
      $region20: #{residual_block_pallas.4} parent=11 // pred_fallthru
        _
    $region12: #{residual_block_pallas.4} parent=5 // pred_fallthru
      _
    %p152 = scmp.lt.s32.totalorder %s11, 2
    // Predicated region
    $region21: #{residual_block_pallas.4} parent=5 // pred_check
      %p153 = pneg %p152
    $region22: #{residual_block_pallas.4} parent=5 // pred_check_branch
      %155 = sbr.rel (%p153) target = $region24
    $region23: #{residual_block_pallas.4} parent=5 // pred_region
      // Predicated region
      $region25: #{residual_block_pallas.4} parent=23 // pred_check
        %p156 = pneg %p31
      $region26: #{residual_block_pallas.4} parent=23 // pred_check_branch
        %158 = sbr.rel (%p156) target = $region28
      $region27: #{residual_block_pallas.4} parent=23 // pred_region
        %s159 = smul.u32 2, %s11
        %p160 = scmp.lt.s32.totalorder %s159, 3
        %s161 = scalar_select %p160, %s159, 3
        %s162 = smul.addr %s161, 4
        %s163 = scalar_lea.vmem %s0, %s162
        %s164 = smul.u32 2, %s11
      $region28: #{residual_block_pallas.4} parent=23 // pred_fallthru
        _
    $region24: #{residual_block_pallas.4} parent=5 // pred_fallthru
      _
    %p165 = scmp.le.s32.totalorder 1, %s11
    %p166 = scmp.lt.s32.totalorder %s11, 3
    %p167 = pnand %p165, %p166
    %p168 = pneg %p167
    // Predicated region
    $region29: #{residual_block_pallas.4} parent=5 // pred_check
      _
    $region30: #{residual_block_pallas.4} parent=5 // pred_check_branch
      %170 = sbr.rel (%p167) target = $region32
    $region31: #{residual_block_pallas.4} parent=5 // pred_region
      %s171 = ssub.s32 %s11, 1
      %s172 = smul.u32 2, %s16
      %p173 = scmp.lt.s32.totalorder %s172, 3
      %s174 = scalar_select %p173, %s172, 3
      %s175 = smul.addr %s174, 4
      %s176 = scalar_lea.vmem %s0, %s175
      %p177 = pneg %p37
      %p178 = pneg %p34
      %p179 = pneg %p58
      %p180 = pneg %p55
      %p181 = pneg %p79
      %p182 = pneg %p76
      %p183 = pneg %p105
      %p184 = pneg %p102
      %s185 = smul.u32 2, %s16
      %p186 = scmp.lt.s32.totalorder %s185, 3
      %s187 = scalar_select %p186, %s185, 3
      %s188 = smul.addr %s187, 4
      %s189 = scalar_lea.vmem %s3, %s188
      %p190 = pneg %p131
      %p191 = pneg %p128
      %p192 = scmp.lt.s32.totalorder %s16, 1
      %s193 = scalar_select %p192, %s16, 1
      %s194 = smul.addr %s193, 2
      %s195 = scalar_lea.vmem %s4, %s194
      %s196 = smul.u32 2, %s16
      %p197 = scmp.lt.s32.totalorder %s196, 3
      %s198 = scalar_select %p197, %s196, 3
      %s199 = smul.addr %s198, 4
      %s200 = scalar_lea.vmem %s0, %s199
      %s201 = smul.u32 2, %s16
      %s202 = smul.u32 2, %s16
      %p203 = scmp.lt.s32.totalorder %s202, 3
      %s204 = scalar_select %p203, %s202, 3
      %s205 = smul.addr %s204, 4
      %s206 = scalar_lea.vmem %s3, %s205
      %s207 = smul.u32 2, %s16
      %p208 = scmp.lt.s32.totalorder %s16, 1
      %s209 = scalar_select %p208, %s16, 1
      %s210 = smul.addr %s209, 2
      %s211 = scalar_lea.vmem %s4, %s210
      %v213 = vld [vmem:[%s1] sm:$0x1]
      %v214 = vld [vmem:[%s1 + $0x1] sm:$0x1]
      %v215 = vld [vmem:[%s200] sm:$0xf]
      %v216 = vld [vmem:[%s200 + $0x4] sm:$0xf]
      %v217 = vunpack.c.l.bf16 %v215
      %v218 = vunpack.c.l.bf16 %v216
      %v219 = vperm.slane %v213, 0
      %v220 = vmul.f32 %v217, %v219
      %v221 = vmul.f32 %v218, %v219
      %v222 = vperm.slane %v214, 0
      %v223 = vadd.f32 %v220, %v222
      %v224 = vadd.f32 %v221, %v222
      %v225 = vmax.f32 %v223, 0.0
      %v226 = vmax.f32 %v224, 0.0
      %vm227 = vcmask 1040384
      %vm228 = vsmask.f32 256
      %vm229 = vmand %vm227, %vm228
      %v230 = vld [vmem:[#allocation2] sm:$0x1]
      %v231 = vsel %vm229, 0, %v230
      %232 = vst [vmem:[#allocation2] sm:$0x1] %v231
      %v233 = vpack.c.bf16 %v225, %v225
      %v234 = vpack.c.bf16 %v226, %v226
      %vm235 = vsmask.f32 4368
      %vm236 = vmor %vm228, %vm235
      %v238 = vshrl.u32 %v233, 16
      %v240 = vrot.slane %v238, 7
      %v241 = vshll.u32 %v233, 16
      %v243 = vor.u32 %v240, %v241
      %v244 = vrot.slane %v240, 4
      %v246 = vshrl.u32 %v234, 16
      %v248 = vrot.slane %v246, 7
      %v249 = vshll.u32 %v234, 16
      %v251 = vor.u32 %v248, %v249
      %v252 = vsel %vm236, %v244, %v251
      %v253 = vrot.slane %v248, 4
      %vm257 = vcmask 1043456
      %vm258 = vsmask.f32 7938
      %vm259 = vmand %vm257, %vm258
      %v260 = vld [vmem:[#allocation2] sm:$0xf]
      %v261 = vsel %vm259, %v243, %v260
      %262 = vst [vmem:[#allocation2] sm:$0xf] %v261
      %263 = vst [vmem:[#allocation2 + $0x4] sm:$0xf] %v252
      %v264 = vld [vmem:[#allocation2 + $0x8] sm:$0x1]
      %v265 = vsel %vm229, %v253, %v264
      %266 = vst [vmem:[#allocation2 + $0x8] sm:$0x1] %v265
      %vm267 = vmand %vm227, %vm258
      %v268 = vld [vmem:[#allocation2 + $0x8] sm:$0x1]
      %v269 = vsel %vm267, 0, %v268
      %270 = vst [vmem:[#allocation2 + $0x8] sm:$0x1] %v269
      %v271 = vld [vmem:[#allocation2] sm:$0xf]
      %v272 = vld [vmem:[#allocation2 + $0x4] sm:$0xf]
      %v273 = vld [vmem:[%s2] sm:$0xf]
      %v274 = vld [vmem:[%s2 + $0x4] sm:$0xf]
      %v275 = vld [vmem:[%s2 + $0x8] sm:$0xf]
      %v276 = vld [vmem:[%s2 + $0xc] sm:$0xf]
      %v277 = vld [vmem:[%s2 + $0x10] sm:$0xf]
      %v278 = vld [vmem:[%s2 + $0x14] sm:$0xf]
      %v279 = vld [vmem:[%s2 + $0x18] sm:$0xf]
      %v280 = vld [vmem:[%s2 + $0x1c] sm:$0xf]
      %v281 = vld [vmem:[%s2 + $0x20] sm:$0xf]
      %v282 = vld [vmem:[%s2 + $0x24] sm:$0xf]
      %v283 = vld [vmem:[%s2 + $0x28] sm:$0xf]
      %v284 = vld [vmem:[%s2 + $0x2c] sm:$0xf]
      %v285 = vld [vmem:[%s2 + $0x30] sm:$0xf]
      %v286 = vld [vmem:[%s2 + $0x34] sm:$0xf]
      %v287 = vld [vmem:[%s2 + $0x38] sm:$0xf]
      %v288 = vld [vmem:[%s2 + $0x3c] sm:$0xf]
      %v289 = vld [vmem:[#allocation2 + $0x8] sm:$0x1]
      %s290 = scalar_lea.vmem %s2, 64
      %v291 = vld [vmem:[%s290] sm:$0xf]
      %v292 = vld [vmem:[%s290 + $0x4] sm:$0xf]
      %v293 = vld [vmem:[%s290 + $0x8] sm:$0xf]
      %v294 = vld [vmem:[%s290 + $0xc] sm:$0xf]
      %v295 = vld [vmem:[%s290 + $0x10] sm:$0xf]
      %v296 = vld [vmem:[%s290 + $0x14] sm:$0xf]
      %v297 = vld [vmem:[%s290 + $0x18] sm:$0xf]
      %v298 = vld [vmem:[%s290 + $0x1c] sm:$0xf]
      %v299 = vld [vmem:[%s290 + $0x20] sm:$0xf]
      %v300 = vld [vmem:[%s290 + $0x24] sm:$0xf]
      %v301 = vld [vmem:[%s290 + $0x28] sm:$0xf]
      %v302 = vld [vmem:[%s290 + $0x2c] sm:$0xf]
      %v303 = vld [vmem:[%s290 + $0x30] sm:$0xf]
      %v304 = vld [vmem:[%s290 + $0x34] sm:$0xf]
      %v305 = vld [vmem:[%s290 + $0x38] sm:$0xf]
      %v306 = vld [vmem:[%s290 + $0x3c] sm:$0xf]
      %v310 = vunpack.c.l.b16 %v271
      %v311 = vunpack.c.l.b16 %v272
      %v312 = vunpack.c.l.b16 %v289
      %v313 = vpack.c.b16 %v311, %v310
      %v314 = vpack.c.b16 %v312, %v312
      %vm315 = vsmask.f32 7424
      %v317 = vshrl.u32 %v313, 16
      %v319 = vshll.u32 %v313, 16
      %v321 = vrot.slane %v319, 1
      %v322 = vor.u32 %v317, %v321
      %v324 = vshll.u32 %v314, 16
      %v326 = vrot.slane %v324, 1
      %v327 = vsel %vm315, %v322, %v326
      %v345 = vunpack.c.l.b16 %v291
      %v346 = vunpack.c.l.b16 %v292
      %v347 = vunpack.c.l.b16 %v293
      %v348 = vunpack.c.l.b16 %v294
      %v349 = vunpack.c.l.b16 %v295
      %v350 = vunpack.c.l.b16 %v296
      %v351 = vunpack.c.l.b16 %v297
      %v352 = vunpack.c.l.b16 %v298
      %v353 = vunpack.c.l.b16 %v299
      %v354 = vunpack.c.l.b16 %v300
      %v355 = vunpack.c.l.b16 %v301
      %v356 = vunpack.c.l.b16 %v302
      %v357 = vunpack.c.l.b16 %v303
      %v358 = vunpack.c.l.b16 %v304
      %v359 = vunpack.c.l.b16 %v305
      %v360 = vunpack.c.l.b16 %v306
      %v361 = vpack.c.b16 %v346, %v345
      %v362 = vpack.c.b16 %v348, %v347
      %v363 = vpack.c.b16 %v350, %v349
      %v364 = vpack.c.b16 %v352, %v351
      %v365 = vpack.c.b16 %v354, %v353
      %v366 = vpack.c.b16 %v356, %v355
      %v367 = vpack.c.b16 %v358, %v357
      %v368 = vpack.c.b16 %v360, %v359
      %377 = vmatpush.bf16.msra.mxu0 %v368
      %378 = vmatpush.bf16.msra.mxu0 %v367
      %379 = vmatpush.bf16.msra.mxu0 %v366
      %380 = vmatpush.bf16.msra.mxu0 %v365
      %381 = vmatpush.bf16.msra.mxu0 %v364
      %382 = vmatpush.bf16.msra.mxu0 %v363
      %383 = vmatpush.bf16.msra.mxu0 %v362
      %384 = vmatpush.bf16.msra.mxu0 %v361
      %385 = vmatmul.bf16.gmra.mxu0 %v327
      %v386 = vpop.f32.mrf.mxu0
      %v387 = vadd.f32 0.0, %v386
      %v388 = vpop.f32.mrf.mxu0
      %v389 = vadd.f32 0.0, %v388
      %390 = vdwg.mxu0
      %v408 = vunpack.c.l.b16 %v273
      %v409 = vunpack.c.l.b16 %v274
      %v410 = vunpack.c.l.b16 %v275
      %v411 = vunpack.c.l.b16 %v276
      %v412 = vunpack.c.l.b16 %v277
      %v413 = vunpack.c.l.b16 %v278
      %v414 = vunpack.c.l.b16 %v279
      %v415 = vunpack.c.l.b16 %v280
      %v416 = vunpack.c.l.b16 %v281
      %v417 = vunpack.c.l.b16 %v282
      %v418 = vunpack.c.l.b16 %v283
      %v419 = vunpack.c.l.b16 %v284
      %v420 = vunpack.c.l.b16 %v285
      %v421 = vunpack.c.l.b16 %v286
      %v422 = vunpack.c.l.b16 %v287
      %v423 = vunpack.c.l.b16 %v288
      %v424 = vpack.c.b16 %v409, %v408
      %v425 = vpack.c.b16 %v411, %v410
      %v426 = vpack.c.b16 %v413, %v412
      %v427 = vpack.c.b16 %v415, %v414
      %v428 = vpack.c.b16 %v417, %v416
      %v429 = vpack.c.b16 %v419, %v418
      %v430 = vpack.c.b16 %v421, %v420
      %v431 = vpack.c.b16 %v423, %v422
      %440 = vmatpush.bf16.msra.mxu0 %v431
      %441 = vmatpush.bf16.msra.mxu0 %v430
      %442 = vmatpush.bf16.msra.mxu0 %v429
      %443 = vmatpush.bf16.msra.mxu0 %v428
      %444 = vmatpush.bf16.msra.mxu0 %v427
      %445 = vmatpush.bf16.msra.mxu0 %v426
      %446 = vmatpush.bf16.msra.mxu0 %v425
      %447 = vmatpush.bf16.msra.mxu0 %v424
      %448 = vmatmul.bf16.gmra.mxu0 %v313
      %v449 = vpop.f32.mrf.mxu0
      %v450 = vadd.f32 %v387, %v449
      %v451 = vpop.f32.mrf.mxu0
      %v452 = vadd.f32 %v389, %v451
      %453 = vdwg.mxu0
      %v454 = vld [vmem:[#allocation2] sm:$0xe]
      %s455 = scalar_lea.vmem %s2, 128
      %v456 = vld [vmem:[%s455] sm:$0xf]
      %v457 = vld [vmem:[%s455 + $0x4] sm:$0xf]
      %v458 = vld [vmem:[%s455 + $0x8] sm:$0xf]
      %v459 = vld [vmem:[%s455 + $0xc] sm:$0xf]
      %v460 = vld [vmem:[%s455 + $0x10] sm:$0xf]
      %v461 = vld [vmem:[%s455 + $0x14] sm:$0xf]
      %v462 = vld [vmem:[%s455 + $0x18] sm:$0xf]
      %v463 = vld [vmem:[%s455 + $0x1c] sm:$0xf]
      %v464 = vld [vmem:[%s455 + $0x20] sm:$0xf]
      %v465 = vld [vmem:[%s455 + $0x24] sm:$0xf]
      %v466 = vld [vmem:[%s455 + $0x28] sm:$0xf]
      %v467 = vld [vmem:[%s455 + $0x2c] sm:$0xf]
      %v468 = vld [vmem:[%s455 + $0x30] sm:$0xf]
      %v469 = vld [vmem:[%s455 + $0x34] sm:$0xf]
      %v470 = vld [vmem:[%s455 + $0x38] sm:$0xf]
      %v471 = vld [vmem:[%s455 + $0x3c] sm:$0xf]
      %v473 = vunpack.c.l.b16 %v454
      %v474 = vpack.c.b16 %v311, %v473
      %vm475 = vcmask 1046528
      %v476 = vrot.slane %v474, 1
      %v477 = vrot.slane %v314, 1
      %v478 = vsel %vm475, %v476, %v477
      %v496 = vunpack.c.l.b16 %v456
      %v497 = vunpack.c.l.b16 %v457
      %v498 = vunpack.c.l.b16 %v458
      %v499 = vunpack.c.l.b16 %v459
      %v500 = vunpack.c.l.b16 %v460
      %v501 = vunpack.c.l.b16 %v461
      %v502 = vunpack.c.l.b16 %v462
      %v503 = vunpack.c.l.b16 %v463
      %v504 = vunpack.c.l.b16 %v464
      %v505 = vunpack.c.l.b16 %v465
      %v506 = vunpack.c.l.b16 %v466
      %v507 = vunpack.c.l.b16 %v467
      %v508 = vunpack.c.l.b16 %v468
      %v509 = vunpack.c.l.b16 %v469
      %v510 = vunpack.c.l.b16 %v470
      %v511 = vunpack.c.l.b16 %v471
      %v512 = vpack.c.b16 %v497, %v496
      %v513 = vpack.c.b16 %v499, %v498
      %v514 = vpack.c.b16 %v501, %v500
      %v515 = vpack.c.b16 %v503, %v502
      %v516 = vpack.c.b16 %v505, %v504
      %v517 = vpack.c.b16 %v507, %v506
      %v518 = vpack.c.b16 %v509, %v508
      %v519 = vpack.c.b16 %v511, %v510
      %528 = vmatpush.bf16.msra.mxu0 %v519
      %529 = vmatpush.bf16.msra.mxu0 %v518
      %530 = vmatpush.bf16.msra.mxu0 %v517
      %531 = vmatpush.bf16.msra.mxu0 %v516
      %532 = vmatpush.bf16.msra.mxu0 %v515
      %533 = vmatpush.bf16.msra.mxu0 %v514
      %534 = vmatpush.bf16.msra.mxu0 %v513
      %535 = vmatpush.bf16.msra.mxu0 %v512
      %536 = vmatmul.bf16.gmra.mxu0 %v478
      %v537 = vpop.f32.mrf.mxu0
      %v538 = vadd.f32 0.0, %v537
      %v539 = vpop.f32.mrf.mxu0
      %v540 = vadd.f32 0.0, %v539
      %541 = vdwg.mxu0
      %v542 = vadd.f32 %v450, %v538
      %v543 = vadd.f32 %v452, %v540
      %v544 = vpack.c.bf16 %v542, %v542
      %v545 = vpack.c.bf16 %v543, %v543
      %546 = vst [vmem:[%s206] sm:$0xf] %v544
      %547 = vst [vmem:[%s206 + $0x4] sm:$0xf] %v545
      %v548 = vadd.f32 %v542, %v543
      %v549 = vrot.slane %v548, 4
      %v550 = vadd.f32 %v548, %v549
      %v551 = vrot.slane %v550, 2
      %v552 = vadd.f32 %v550, %v551
      %v553 = vrot.slane %v552, 1
      %v554 = vadd.f32 %v552, %v553
      %v555 = vadd.f32 %v554, 0.0
      %v556 = vmul.f32 %v542, %v542
      %v557 = vmul.f32 %v543, %v543
      %v558 = vadd.f32 %v556, %v557
      %v559 = vrot.slane %v558, 4
      %v560 = vadd.f32 %v558, %v559
      %v561 = vrot.slane %v560, 2
      %v562 = vadd.f32 %v560, %v561
      %v563 = vrot.slane %v562, 1
      %v564 = vadd.f32 %v562, %v563
      %v565 = vadd.f32 %v564, 0.0
      %vm566 = vcmask 1040384
      %v567 = vsel %vm566, %v555, %v565
      %568 = vst [vmem:[%s211] sm:$0x3] %v567
      %s569 = smul.u32 2, %s16
      %p570 = scmp.lt.s32.totalorder %s569, 3
      %s571 = scalar_select %p570, %s569, 3
      %s572 = smul.addr %s571, 4
      %s573 = scalar_lea.vmem %s3, %s572
      %p574 = scmp.lt.s32.totalorder %s16, 1
      %s575 = scalar_select %p574, %s16, 1
      %s576 = smul.addr %s575, 2
      %s577 = scalar_lea.vmem %s4, %s576
      // Predicated region
      $region33: #{residual_block_pallas.4} parent=31 // pred_check
        %p578 = pneg %p102
      $region34: #{residual_block_pallas.4} parent=31 // pred_check_branch
        %580 = sbr.rel (%p578) target = $region36
      $region35: #{residual_block_pallas.4} parent=31 // pred_region
        %s581 = smul.u32 2, %s16
      $region36: #{residual_block_pallas.4} parent=31 // pred_fallthru
        _
      // Predicated region
      $region37: #{residual_block_pallas.4} parent=31 // pred_check
        %p582 = pneg %p128
      $region38: #{residual_block_pallas.4} parent=31 // pred_check_branch
        %584 = sbr.rel (%p582) target = $region40
      $region39: #{residual_block_pallas.4} parent=31 // pred_region
        _
      $region40: #{residual_block_pallas.4} parent=31 // pred_fallthru
        _
    $region32: #{residual_block_pallas.4} parent=5 // pred_fallthru
      _
    %p585 = scmp.le.s32.totalorder 2, %s11
    // Predicated region
    $region41: #{residual_block_pallas.4} parent=5 // pred_check
      %p586 = pneg %p585
    $region42: #{residual_block_pallas.4} parent=5 // pred_check_branch
      %588 = sbr.rel (%p586) target = $region44
    $region43: #{residual_block_pallas.4} parent=5 // pred_region
      %s589 = ssub.s32 %s11, 2
      // Predicated region
      $region45: #{residual_block_pallas.4} parent=43 // pred_check
        %p590 = pneg %p108
      $region46: #{residual_block_pallas.4} parent=43 // pred_check_branch
        %592 = sbr.rel (%p590) target = $region48
      $region47: #{residual_block_pallas.4} parent=43 // pred_region
        %s593 = smul.u32 2, %s17
        %p594 = scmp.lt.s32.totalorder %s593, 3
        %s595 = scalar_select %p594, %s593, 3
        %s596 = smul.addr %s595, 4
        %s597 = scalar_lea.vmem %s3, %s596
      $region48: #{residual_block_pallas.4} parent=43 // pred_fallthru
        _
      // Predicated region
      $region49: #{residual_block_pallas.4} parent=43 // pred_check
        %p598 = pneg %p134
      $region50: #{residual_block_pallas.4} parent=43 // pred_check_branch
        %600 = sbr.rel (%p598) target = $region52
      $region51: #{residual_block_pallas.4} parent=43 // pred_region
        %p601 = scmp.lt.s32.totalorder %s17, 1
        %s602 = scalar_select %p601, %s17, 1
        %s603 = smul.addr %s602, 2
        %s604 = scalar_lea.vmem %s4, %s603
      $region52: #{residual_block_pallas.4} parent=43 // pred_fallthru
        _
    $region44: #{residual_block_pallas.4} parent=5 // pred_fallthru
      _
  $region6: #{residual_block_pallas.4} parent=0 // loop_footer
    %s15 = sadd.s32 1, %s11
  $region7: #{residual_block_pallas.4} parent=0 // loop_footer_branch
    %10 = sbr.rel target = $region3
  $region8: #{residual_block_pallas.4} parent=0 // loop_exit
    _

// kernel: residual_block_pallas.5
$region0: #{residual_block_pallas.5}
  #allocation0 [shape = 'u32[]', space=smem, size = 0x4, offset = 0x4, fixed_abs, tag = 'smem constant byte address 0x4 - core index']
  #allocation1 [shape = 'u32[72,128]{1,0:T(1,128)}', space=vmem, size = 0x9000, scoped, tag = 'internal scratch']
  %s0 = inlined_call_operand.vmem [shape: bf16[32,128], index: 0, kind: input, shape index: {}]
  %s1 = inlined_call_operand.vmem [shape: bf16[32,64], index: 1, kind: input, shape index: {}]
  %s2 = inlined_call_operand.vmem [shape: f32[3,128], index: 2, kind: input, shape index: {}]
  %s3 = inlined_call_operand.vmem [shape: bf16[64,128], index: 3, kind: input, shape index: {}]
  %s4 = inlined_call_operand.vmem [shape: f32[32,128], index: 4, kind: output, shape index: {}]
  %s5 = sld [smem:[#allocation0]]
  $region49: #{residual_block_pallas.5} parent=0
    _
  %s7 = ssub.s32 1, %s5
  %s8 = scalar_select 0, %s7, %s5
  loop: start=0, step=1, limit=4
  $region2: #{residual_block_pallas.5} parent=0 // loop_pre_header
    _
  $region3: #{residual_block_pallas.5} parent=0 // loop_header
    %s10 = sphi 0, %s14
    %p11 = scmp.ge.s32.totalorder %s10, 4
    %s20 = sphi 0, %s22
    %s23 = sphi 0, %s20
    %s24 = sphi 0, %s23
    %s40 = sphi 0, %s24
    %s46 = sphi 0, %s48
    %s49 = sphi 0, %s46
    %s50 = sphi 0, %s49
    %s66 = sphi 0, %s50
    %s70 = sphi 0, %s70
    %s72 = sphi 0, %s70
    %s73 = sphi 0, %s72
    %s87 = sphi 0, %s73
    %s91 = sphi 0, %s91
    %s93 = sphi 0, %s91
    %s94 = sphi 0, %s93
    %s108 = sphi 0, %s94
    %s114 = sphi 0, %s116
    %s117 = sphi 0, %s114
    %s118 = sphi 0, %s117
    %s134 = sphi 0, %s118
  $region4: #{residual_block_pallas.5} parent=0 // loop_header_branch
    %13 = sbr.rel (%p11) target = $region8
  $region5: #{residual_block_pallas.5} parent=0 // loop_body
    %s15 = ssub.s32 %s10, 1
    %s16 = ssub.s32 %s10, 2
    %s17 = sadd.s32 %s10, 1
    %s18 = ssub.s32 %s10, %s17
    %p19 = scmp.eq.s32.totalorder %s18, 0
    %s21 = sadd.s32 %s20, 1
    %s22 = scalar_select %p19, %s20, %s21
    %p25 = pneg %p19
    %p26 = scmp.eq.s32.totalorder %s10, 1
    %p27 = por %p25, %p26
    %p28 = scmp.ne.s32.totalorder %s20, %s23
    %p29 = scmp.eq.s32.totalorder %s10, 0
    %p30 = por %p28, %p29
    %p31 = scmp.ne.s32.totalorder %s20, %s23
    %p32 = scmp.eq.s32.totalorder %s15, 1
    %p33 = por %p31, %p32
    %p34 = scmp.ne.s32.totalorder %s23, %s24
    %p35 = scmp.eq.s32.totalorder %s15, 0
    %p36 = por %p34, %p35
    %p37 = scmp.ne.s32.totalorder %s23, %s24
    %p38 = scmp.eq.s32.totalorder %s16, 1
    %p39 = por %p37, %p38
    %p41 = scmp.ne.s32.totalorder %s24, %s40
    %p42 = scmp.eq.s32.totalorder %s16, 0
    %p43 = por %p41, %p42
    %s44 = ssub.s32 %s10, %s17
    %p45 = scmp.eq.s32.totalorder %s44, 0
    %s47 = sadd.s32 %s46, 1
    %s48 = scalar_select %p45, %s46, %s47
    %p51 = pneg %p45
    %p52 = scmp.eq.s32.totalorder %s10, 1
    %p53 = por %p51, %p52
    %p54 = scmp.ne.s32.totalorder %s46, %s49
    %p55 = scmp.eq.s32.totalorder %s10, 0
    %p56 = por %p54, %p55
    %p57 = scmp.ne.s32.totalorder %s46, %s49
    %p58 = scmp.eq.s32.totalorder %s15, 1
    %p59 = por %p57, %p58
    %p60 = scmp.ne.s32.totalorder %s49, %s50
    %p61 = scmp.eq.s32.totalorder %s15, 0
    %p62 = por %p60, %p61
    %p63 = scmp.ne.s32.totalorder %s49, %s50
    %p64 = scmp.eq.s32.totalorder %s16, 1
    %p65 = por %p63, %p64
    %p67 = scmp.ne.s32.totalorder %s50, %s66
    %p68 = scmp.eq.s32.totalorder %s16, 0
    %p69 = por %p67, %p68
    %s71 = sadd.s32 %s70, 1
    %p74 = scmp.eq.s32.totalorder %s10, 1
    %p75 = scmp.ne.s32.totalorder %s70, %s72
    %p76 = scmp.eq.s32.totalorder %s10, 0
    %p77 = por %p75, %p76
    %p78 = scmp.ne.s32.totalorder %s70, %s72
    %p79 = scmp.eq.s32.totalorder %s15, 1
    %p80 = por %p78, %p79
    %p81 = scmp.ne.s32.totalorder %s72, %s73
    %p82 = scmp.eq.s32.totalorder %s15, 0
    %p83 = por %p81, %p82
    %p84 = scmp.ne.s32.totalorder %s72, %s73
    %p85 = scmp.eq.s32.totalorder %s16, 1
    %p86 = por %p84, %p85
    %p88 = scmp.ne.s32.totalorder %s73, %s87
    %p89 = scmp.eq.s32.totalorder %s16, 0
    %p90 = por %p88, %p89
    %s92 = sadd.s32 %s91, 1
    %p95 = scmp.eq.s32.totalorder %s10, 1
    %p96 = scmp.ne.s32.totalorder %s91, %s93
    %p97 = scmp.eq.s32.totalorder %s10, 0
    %p98 = por %p96, %p97
    %p99 = scmp.ne.s32.totalorder %s91, %s93
    %p100 = scmp.eq.s32.totalorder %s15, 1
    %p101 = por %p99, %p100
    %p102 = scmp.ne.s32.totalorder %s93, %s94
    %p103 = scmp.eq.s32.totalorder %s15, 0
    %p104 = por %p102, %p103
    %p105 = scmp.ne.s32.totalorder %s93, %s94
    %p106 = scmp.eq.s32.totalorder %s16, 1
    %p107 = por %p105, %p106
    %p109 = scmp.ne.s32.totalorder %s94, %s108
    %p110 = scmp.eq.s32.totalorder %s16, 0
    %p111 = por %p109, %p110
    %s112 = ssub.s32 %s10, %s17
    %p113 = scmp.eq.s32.totalorder %s112, 0
    %s115 = sadd.s32 %s114, 1
    %s116 = scalar_select %p113, %s114, %s115
    %p119 = pneg %p113
    %p120 = scmp.eq.s32.totalorder %s10, 1
    %p121 = por %p119, %p120
    %p122 = scmp.ne.s32.totalorder %s114, %s117
    %p123 = scmp.eq.s32.totalorder %s10, 0
    %p124 = por %p122, %p123
    %p125 = scmp.ne.s32.totalorder %s114, %s117
    %p126 = scmp.eq.s32.totalorder %s15, 1
    %p127 = por %p125, %p126
    %p128 = scmp.ne.s32.totalorder %s117, %s118
    %p129 = scmp.eq.s32.totalorder %s15, 0
    %p130 = por %p128, %p129
    %p131 = scmp.ne.s32.totalorder %s117, %s118
    %p132 = scmp.eq.s32.totalorder %s16, 1
    %p133 = por %p131, %p132
    %p135 = scmp.ne.s32.totalorder %s118, %s134
    %p136 = scmp.eq.s32.totalorder %s16, 0
    %p137 = por %p135, %p136
    %p138 = scmp.le.s32.totalorder 1, %s10
    %p139 = scmp.lt.s32.totalorder %s10, 3
    %p140 = pnand %p138, %p139
    %p141 = pneg %p140
    // Predicated region
    $region9: #{residual_block_pallas.5} parent=5 // pred_check
      _
    $region10: #{residual_block_pallas.5} parent=5 // pred_check_branch
      %143 = sbr.rel (%p140) target = $region12
    $region11: #{residual_block_pallas.5} parent=5 // pred_region
      %s144 = ssub.s32 %s10, 1
      // Predicated region
      $region13: #{residual_block_pallas.5} parent=11 // pred_check
        %p145 = pneg %p83
      $region14: #{residual_block_pallas.5} parent=11 // pred_check_branch
        %147 = sbr.rel (%p145) target = $region16
      $region15: #{residual_block_pallas.5} parent=11 // pred_region
        _
      $region16: #{residual_block_pallas.5} parent=11 // pred_fallthru
        _
      // Predicated region
      $region17: #{residual_block_pallas.5} parent=11 // pred_check
        %p148 = pneg %p104
      $region18: #{residual_block_pallas.5} parent=11 // pred_check_branch
        %150 = sbr.rel (%p148) target = $region20
      $region19: #{residual_block_pallas.5} parent=11 // pred_region
        _
      $region20: #{residual_block_pallas.5} parent=11 // pred_fallthru
        _
    $region12: #{residual_block_pallas.5} parent=5 // pred_fallthru
      _
    %p151 = scmp.lt.s32.totalorder %s10, 2
    // Predicated region
    $region21: #{residual_block_pallas.5} parent=5 // pred_check
      %p152 = pneg %p151
    $region22: #{residual_block_pallas.5} parent=5 // pred_check_branch
      %154 = sbr.rel (%p152) target = $region24
    $region23: #{residual_block_pallas.5} parent=5 // pred_region
      // Predicated region
      $region25: #{residual_block_pallas.5} parent=23 // pred_check
        %p155 = pneg %p30
      $region26: #{residual_block_pallas.5} parent=23 // pred_check_branch
        %157 = sbr.rel (%p155) target = $region28
      $region27: #{residual_block_pallas.5} parent=23 // pred_region
        %s158 = smul.u32 2, %s10
        %p159 = scmp.lt.s32.totalorder %s158, 3
        %s160 = scalar_select %p159, %s158, 3
        %s161 = smul.addr %s160, 4
        %s162 = scalar_lea.vmem %s0, %s161
        %s163 = smul.u32 2, %s10
      $region28: #{residual_block_pallas.5} parent=23 // pred_fallthru
        _
      // Predicated region
      $region29: #{residual_block_pallas.5} parent=23 // pred_check
        %p164 = pneg %p56
      $region30: #{residual_block_pallas.5} parent=23 // pred_check_branch
        %166 = sbr.rel (%p164) target = $region32
      $region31: #{residual_block_pallas.5} parent=23 // pred_region
        %s167 = smul.u32 2, %s10
        %p168 = scmp.lt.s32.totalorder %s167, 3
        %s169 = scalar_select %p168, %s167, 3
        %s170 = smul.addr %s169, 4
        %s171 = scalar_lea.vmem %s1, %s170
        %s172 = smul.u32 2, %s10
      $region32: #{residual_block_pallas.5} parent=23 // pred_fallthru
        _
    $region24: #{residual_block_pallas.5} parent=5 // pred_fallthru
      _
    %p173 = scmp.le.s32.totalorder 1, %s10
    %p174 = scmp.lt.s32.totalorder %s10, 3
    %p175 = pnand %p173, %p174
    %p176 = pneg %p175
    // Predicated region
    $region33: #{residual_block_pallas.5} parent=5 // pred_check
      _
    $region34: #{residual_block_pallas.5} parent=5 // pred_check_branch
      %178 = sbr.rel (%p175) target = $region36
    $region35: #{residual_block_pallas.5} parent=5 // pred_region
      %s179 = ssub.s32 %s10, 1
      %s180 = smul.u32 2, %s15
      %p181 = scmp.lt.s32.totalorder %s180, 3
      %s182 = scalar_select %p181, %s180, 3
      %s183 = smul.addr %s182, 4
      %s184 = scalar_lea.vmem %s0, %s183
      %p185 = pneg %p36
      %p186 = pneg %p33
      %s187 = smul.u32 2, %s15
      %p188 = scmp.lt.s32.totalorder %s187, 3
      %s189 = scalar_select %p188, %s187, 3
      %s190 = smul.addr %s189, 4
      %s191 = scalar_lea.vmem %s1, %s190
      %p192 = pneg %p62
      %p193 = pneg %p59
      %p194 = pneg %p83
      %p195 = pneg %p80
      %p196 = pneg %p104
      %p197 = pneg %p101
      %p198 = pneg %p130
      %p199 = pneg %p127
      %s200 = smul.u32 2, %s15
      %p201 = scmp.lt.s32.totalorder %s200, 3
      %s202 = scalar_select %p201, %s200, 3
      %s203 = smul.addr %s202, 8
      %s204 = scalar_lea.vmem %s4, %s203
      %s205 = smul.u32 2, %s15
      %p206 = scmp.lt.s32.totalorder %s205, 3
      %s207 = scalar_select %p206, %s205, 3
      %s208 = smul.addr %s207, 4
      %s209 = scalar_lea.vmem %s0, %s208
      %s210 = smul.u32 2, %s15
      %s211 = smul.u32 2, %s15
      %p212 = scmp.lt.s32.totalorder %s211, 3
      %s213 = scalar_select %p212, %s211, 3
      %s214 = smul.addr %s213, 4
      %s215 = scalar_lea.vmem %s1, %s214
      %s216 = smul.u32 2, %s15
      %s217 = smul.u32 2, %s15
      %p218 = scmp.lt.s32.totalorder %s217, 3
      %s219 = scalar_select %p218, %s217, 3
      %s220 = smul.addr %s219, 8
      %s221 = scalar_lea.vmem %s4, %s220
      %s222 = smul.u32 2, %s15
      %v224 = vld [vmem:[%s2] sm:$0x1]
      %v225 = vld [vmem:[%s2 + $0x1] sm:$0x1]
      %v226 = vld [vmem:[%s2 + $0x2] sm:$0x1]
      %v227 = vld [vmem:[%s215] sm:$0xf]
      %v228 = vld [vmem:[%s215 + $0x4] sm:$0xf]
      %v229 = vld [vmem:[%s3] sm:$0xf]
      %v230 = vld [vmem:[%s3 + $0x4] sm:$0xf]
      %v231 = vld [vmem:[%s3 + $0x8] sm:$0xf]
      %v232 = vld [vmem:[%s3 + $0xc] sm:$0xf]
      %v233 = vld [vmem:[%s3 + $0x10] sm:$0xf]
      %v234 = vld [vmem:[%s3 + $0x14] sm:$0xf]
      %v235 = vld [vmem:[%s3 + $0x18] sm:$0xf]
      %v236 = vld [vmem:[%s3 + $0x1c] sm:$0xf]
      %v239 = vunpack.c.l.b16 %v227
      %v240 = vunpack.c.l.b16 %v228
      %v241 = vpack.c.b16 %v240, %v239
      %v250 = vunpack.c.l.b16 %v229
      %v251 = vunpack.c.l.b16 %v230
      %v252 = vunpack.c.l.b16 %v231
      %v253 = vunpack.c.l.b16 %v232
      %v254 = vunpack.c.l.b16 %v233
      %v255 = vunpack.c.l.b16 %v234
      %v256 = vunpack.c.l.b16 %v235
      %v257 = vunpack.c.l.b16 %v236
      %v258 = vpack.c.b16 %v251, %v250
      %v259 = vpack.c.b16 %v253, %v252
      %v260 = vpack.c.b16 %v255, %v254
      %v261 = vpack.c.b16 %v257, %v256
      %vm266 = vcmask 523264
      %v268 = vsel %vm266, %v241, 0
      %270 = vmatpush.bf16.msra.mxu0 0
      %271 = vmatpush.bf16.msra.mxu0 0
      %272 = vmatpush.bf16.msra.mxu0 0
      %273 = vmatpush.bf16.msra.mxu0 0
      %274 = vmatpush.bf16.msra.mxu0 %v261
      %275 = vmatpush.bf16.msra.mxu0 %v260
      %276 = vmatpush.bf16.msra.mxu0 %v259
      %277 = vmatpush.bf16.msra.mxu0 %v258
      %278 = vmatmul.bf16.gmra.mxu0 %v268
      %v279 = vpop.f32.mrf.mxu0
      %v280 = vadd.f32 0.0, %v279
      %v281 = vpop.f32.mrf.mxu0
      %v282 = vadd.f32 0.0, %v281
      %283 = vdwg.mxu0
      %v284 = vld [vmem:[%s209] sm:$0xf]
      %v285 = vld [vmem:[%s209 + $0x4] sm:$0xf]
      %v286 = vunpack.c.l.bf16 %v284
      %v287 = vunpack.c.l.bf16 %v285
      %v288 = vperm.slane %v224, 0
      %v289 = vmul.f32 %v286, %v288
      %v290 = vmul.f32 %v287, %v288
      %v291 = vperm.slane %v225, 0
      %v292 = vadd.f32 %v289, %v291
      %v293 = vadd.f32 %v290, %v291
      %v294 = vadd.f32 %v292, %v280
      %v295 = vadd.f32 %v293, %v282
      %v296 = vperm.slane %v226, 0
      %v297 = vadd.f32 %v294, %v296
      %v298 = vadd.f32 %v295, %v296
      %v299 = vmax.f32 %v297, 0.0
      %v300 = vmax.f32 %v298, 0.0
      %301 = vst [vmem:[%s221] sm:$0xff] %v299
      %302 = vst [vmem:[%s221 + $0x8] sm:$0xff] %v300
      %s303 = smul.u32 2, %s15
      %p304 = scmp.lt.s32.totalorder %s303, 3
      %s305 = scalar_select %p304, %s303, 3
      %s306 = smul.addr %s305, 8
      %s307 = scalar_lea.vmem %s4, %s306
      // Predicated region
      $region37: #{residual_block_pallas.5} parent=35 // pred_check
        %p308 = pneg %p127
      $region38: #{residual_block_pallas.5} parent=35 // pred_check_branch
        %310 = sbr.rel (%p308) target = $region40
      $region39: #{residual_block_pallas.5} parent=35 // pred_region
        %s311 = smul.u32 2, %s15
      $region40: #{residual_block_pallas.5} parent=35 // pred_fallthru
        _
    $region36: #{residual_block_pallas.5} parent=5 // pred_fallthru
      _
    %p312 = scmp.le.s32.totalorder 2, %s10
    // Predicated region
    $region41: #{residual_block_pallas.5} parent=5 // pred_check
      %p313 = pneg %p312
    $region42: #{residual_block_pallas.5} parent=5 // pred_check_branch
      %315 = sbr.rel (%p313) target = $region44
    $region43: #{residual_block_pallas.5} parent=5 // pred_region
      %s316 = ssub.s32 %s10, 2
      // Predicated region
      $region45: #{residual_block_pallas.5} parent=43 // pred_check
        %p317 = pneg %p133
      $region46: #{residual_block_pallas.5} parent=43 // pred_check_branch
        %319 = sbr.rel (%p317) target = $region48
      $region47: #{residual_block_pallas.5} parent=43 // pred_region
        %s320 = smul.u32 2, %s16
        %p321 = scmp.lt.s32.totalorder %s320, 3
        %s322 = scalar_select %p321, %s320, 3
        %s323 = smul.addr %s322, 8
        %s324 = scalar_lea.vmem %s4, %s323
      $region48: #{residual_block_pallas.5} parent=43 // pred_fallthru
        _
    $region44: #{residual_block_pallas.5} parent=5 // pred_fallthru
      _
  $region6: #{residual_block_pallas.5} parent=0 // loop_footer
    %s14 = sadd.s32 1, %s10
  $region7: #{residual_block_pallas.5} parent=0 // loop_footer_branch
    %9 = sbr.rel target = $region3
  $region8: #{residual_block_pallas.5} parent=0 // loop_exit
    _

</llo_original>
